<compile_context>
chip_gen: v7x
topology: tpu7x:2x2x1
jax: 0.10.0
libtpu: 0.0.40
codegen_flags: <defaults>
</compile_context>

<pallas_src>
import math

import jax
import jax.numpy as jnp
from jax.experimental import pallas as pl
from jax.experimental.pallas import tpu as pltpu

# ---------------- config (small synthetic shapes) ----------------
B = 2            # batch
L = 8            # max_len (seq)
D = 32           # d_model
H = 4            # n_head
HD = D // H      # head_dim
F = 64           # feedforward_dim
NUM_LAYERS = 2   # -> 1 RelTransformerLayer + 1 TwoStreamRelTransformerLayer
EPS = 1e-12
SCALE = math.sqrt(D // H)        # scale=True
INV_SCALE = 1.0 / SCALE
NEG_INF = -1e30


# ---------------- in-kernel building blocks (traced inside the fused kernels) ----------------
def _add_layernorm(x, res, g, b):
    # LayerNorm(x + residual), eps=1e-12, biased variance (matches nn.LayerNorm)
    y = x + res
    mu = jnp.mean(y, axis=-1, keepdims=True)
    var = jnp.mean(jnp.square(y - mu), axis=-1, keepdims=True)
    return (y - mu) * jax.lax.rsqrt(var + EPS) * g + b


def _ffn_body(x, w1, b1, w2, b2):
    # Linear -> ReLU -> (Dropout=id) -> Linear -> (Dropout=id); bf16 MXU inputs, f32 accum.
    h1 = jnp.dot(x.astype(jnp.bfloat16), w1, preferred_element_type=jnp.float32) + b1
    h1 = jnp.maximum(h1, 0.0)
    return jnp.dot(h1.astype(jnp.bfloat16), w2, preferred_element_type=jnp.float32) + b2


def _split_heads(x):
    # [L, D] -> [H, L, HD]: move heads from the lane dim to a leading batch dim so the
    # attention matmuls run as head-batched einsums (one dot_general each).
    # TODO(synk): at real shapes this relayout is done outside the kernel / by BlockSpecs.
    return jnp.stack([x[:, h * HD:(h + 1) * HD] for h in range(H)], axis=0)


def _merge_heads(o3):
    # [H, L, HD] -> [L, D] (heads packed back along lanes for the residual / LN / FFN path).
    return jnp.concatenate([o3[h] for h in range(H)], axis=1)


def _rel_bd(q, rwb, r_bf):
    """Shifted BD term of relative attention: [H, L, L] f32.

    BD_full = (q + r_w_bias) @ r^T over all 2L relative positions, computed as ONE
    [H*L, HD] x [HD, 2L] MXU matmul; then bd[h, i, j] = BD_full[h, i, L + j - i].
    """
    q_bd = (q + rwb) * INV_SCALE                                     # hoisted bias + 1/scale
    qd2 = jnp.concatenate([q_bd[:, h * HD:(h + 1) * HD] for h in range(H)],
                          axis=0).astype(jnp.bfloat16)               # [H*L, HD]
    bd_full = jax.lax.dot_general(qd2, r_bf, (((1,), (1,)), ((), ())),
                                  preferred_element_type=jnp.float32)  # [H*L, 2L]
    bd_full = bd_full.reshape(H, L, 2 * L)
    # Transformer-XL shift, vectorized over heads; result stays in vregs (no scratch).
    # TODO(synk): replace the static unroll with a strided pltpu.roll at real L.
    return jnp.concatenate(
        [bd_full[:, i:i + 1, L - i:2 * L - i] for i in range(L)], axis=1)   # [H, L, L]


def _attention(q_ac3, bd, k3, v3, am):
    # q_ac3/k3/v3: [H, L, HD] bf16; bd: [H, L, L] f32; am: [1, 1, L] additive key mask.
    ac = jnp.einsum('hqd,hkd->hqk', q_ac3, k3,
                    preferred_element_type=jnp.float32)              # [H, L, L]
    logits = ac + bd + am
    mx = jnp.max(logits, axis=-1, keepdims=True)
    p = jnp.exp(logits - mx)
    denom = jnp.sum(p, axis=-1, keepdims=True)
    o3 = jnp.einsum('hqk,hkd->hqd', p.astype(jnp.bfloat16), v3,
                    preferred_element_type=jnp.float32)              # [H, L, HD]
    # normalize the small [H, L, HD] output via EUP reciprocal (not the [H, L, L] probs)
    return _merge_heads(o3 * pl.reciprocal(denom, approx=True))      # [L, D]


# ---------------- fused layer kernels (one pallas_call per transformer layer) ----------------
def _rel_layer_kernel(x_ref, am_ref, r_ref, wqkv_ref, rrb_ref, rwb_ref,
                      n1g_ref, n1b_ref, w1_ref, b1_ref, w2_ref, b2_ref,
                      n2g_ref, n2b_ref, o_ref):
    x = x_ref[...]                                                   # [L, D] f32 (one batch)
    qkv = jnp.dot(x.astype(jnp.bfloat16), wqkv_ref[...],
                  preferred_element_type=jnp.float32)                # fused q|k|v projection
    q, k, v = qkv[:, :D], qkv[:, D:2 * D], qkv[:, 2 * D:]
    am = am_ref[...]                                                 # [1, 1, L]
    q_ac3 = _split_heads((q + rrb_ref[...]) * INV_SCALE).astype(jnp.bfloat16)
    bd = _rel_bd(q, rwb_ref[...], r_ref[...])
    k3 = _split_heads(k).astype(jnp.bfloat16)
    v3 = _split_heads(v).astype(jnp.bfloat16)
    attn = _attention(q_ac3, bd, k3, v3, am)
    hh = _add_layernorm(attn, x, n1g_ref[...], n1b_ref[...])         # norm1(x + attn)
    f = _ffn_body(hh, w1_ref[...], b1_ref[...], w2_ref[...], b2_ref[...])
    o_ref[...] = _add_layernorm(f, hh, n2g_ref[...], n2b_ref[...])   # norm2(hh + ffn)


def _two_stream_kernel(h_ref, l_ref, am_ref, r_ref, wqkv_ref, wkv_ref, rrb_ref, rwb_ref,
                       n1g_ref, n1b_ref, w1_ref, b1_ref, w2_ref, b2_ref,
                       n2g_ref, n2b_ref, hh_ref, hl_ref):
    hx = h_ref[...]
    lx = l_ref[...]
    am = am_ref[...]
    qkv_h = jnp.dot(hx.astype(jnp.bfloat16), wqkv_ref[...],
                    preferred_element_type=jnp.float32)              # q | k_h | v_h
    kv_l = jnp.dot(lx.astype(jnp.bfloat16), wkv_ref[...],
                   preferred_element_type=jnp.float32)               # k_l | v_l
    q, k_h, v_h = qkv_h[:, :D], qkv_h[:, D:2 * D], qkv_h[:, 2 * D:]
    k_l, v_l = kv_l[:, :D], kv_l[:, D:]
    # q projection, biased queries and the shifted BD term are shared by both streams
    # (self_attn_hh / self_attn_hl are deep copies with identical weights).
    q_ac3 = _split_heads((q + rrb_ref[...]) * INV_SCALE).astype(jnp.bfloat16)
    bd = _rel_bd(q, rwb_ref[...], r_ref[...])
    attn_hh = _attention(q_ac3, bd, _split_heads(k_h).astype(jnp.bfloat16),
                         _split_heads(v_h).astype(jnp.bfloat16), am)
    attn_hl = _attention(q_ac3, bd, _split_heads(k_l).astype(jnp.bfloat16),
                         _split_heads(v_l).astype(jnp.bfloat16), am)
    hl_ref[...] = attn_hl                                            # hl = raw attention output
    hh = _add_layernorm(attn_hh, hx, n1g_ref[...], n1b_ref[...])
    f = _ffn_body(hh, w1_ref[...], b1_ref[...], w2_ref[...], b2_ref[...])
    hh_ref[...] = _add_layernorm(f, hh, n2g_ref[...], n2b_ref[...])


# ---------------- wrappers ----------------
_ROW_SPEC = pl.BlockSpec((L, D), lambda b: (b, 0))            # one batch's [L, D] rows
_MASK_SPEC = pl.BlockSpec((1, 1, L), lambda b: (b, 0, 0))     # that batch's additive mask
_PARALLEL = pltpu.CompilerParams(dimension_semantics=("parallel",))


def _const_spec(shape):
    # full-extent block, resident across the (parallel) batch grid axis
    nd = len(shape)

    def idx(b):
        return (0,) * nd

    return pl.BlockSpec(shape, idx)


def rel_layer_call(x2d, addm, r_bf, shared, lp):
    args = (x2d, addm, r_bf, shared["wqkv"], shared["rrb"], shared["rwb"],
            lp["n1g"], lp["n1b"], lp["w1"], lp["b1"], lp["w2"], lp["b2"],
            lp["n2g"], lp["n2b"])
    in_specs = [_ROW_SPEC, _MASK_SPEC] + [_const_spec(a.shape) for a in args[2:]]
    return pl.pallas_call(
        _rel_layer_kernel,
        grid=(B,),
        in_specs=in_specs,
        out_specs=_ROW_SPEC,
        out_shape=jax.ShapeDtypeStruct((B * L, D), jnp.float32),
        compiler_params=_PARALLEL,
    )(*args)


def two_stream_call(h2d, l2d, addm, r_bf, shared, lp):
    args = (h2d, l2d, addm, r_bf, shared["wqkv"], shared["wkv"], shared["rrb"], shared["rwb"],
            lp["n1g"], lp["n1b"], lp["w1"], lp["b1"], lp["w2"], lp["b2"],
            lp["n2g"], lp["n2b"])
    in_specs = [_ROW_SPEC, _ROW_SPEC, _MASK_SPEC] + [_const_spec(a.shape) for a in args[3:]]
    return pl.pallas_call(
        _two_stream_kernel,
        grid=(B,),
        in_specs=in_specs,
        out_specs=(_ROW_SPEC, _ROW_SPEC),
        out_shape=(jax.ShapeDtypeStruct((B * L, D), jnp.float32),
                   jax.ShapeDtypeStruct((B * L, D), jnp.float32)),
        compiler_params=_PARALLEL,
    )(*args)


def _pack_layer(p):
    return dict(
        n1g=p["n1_g"].reshape(1, D), n1b=p["n1_b"].reshape(1, D),
        n2g=p["n2_g"].reshape(1, D), n2b=p["n2_b"].reshape(1, D),
        w1=p["w1"].astype(jnp.bfloat16), b1=p["b1"].reshape(1, F),
        w2=p["w2"].astype(jnp.bfloat16), b2=p["b2"].reshape(1, D))


def transformer_encoder(hx, lx, mask, params):
    ap = params["attn"]
    # RelativeSinusoidalPositionalEmbedding(mask) + r_linear done in plain JAX (a dedicated
    # pallas_call for a [16,8]x[8,8] matmul was pure launch/DMA overhead).
    positions = jnp.arange(-L, L) + params["origin_shift"]
    r = params["pos_table"][positions] @ ap["wr"]                     # [2L, HD]
    r_bf = r.astype(jnp.bfloat16)

    # additive key mask (0 keep / -1e30 pad), broadcast-ready shape [B, 1, L]
    addm = jnp.where(mask == 0, NEG_INF, 0.0).astype(jnp.float32).reshape(B, 1, L)

    shared = dict(
        wqkv=jnp.concatenate([ap["wq"], ap["wkv"]], axis=1).astype(jnp.bfloat16),  # [D, 3D]
        wkv=ap["wkv"].astype(jnp.bfloat16),                                        # [D, 2D]
        rrb=ap["r_r_bias"].reshape(1, D),    # heads packed along the lane dim
        rwb=ap["r_w_bias"].reshape(1, D),
    )

    h2d = hx.reshape(B * L, D)
    for lp in params["layers"]:
        h2d = rel_layer_call(h2d, addm, r_bf, shared, _pack_layer(lp))
    hh2d, hl2d = two_stream_call(h2d, lx.reshape(B * L, D), addm, r_bf, shared,
                                 _pack_layer(params["two_stream"]))
    return hh2d.reshape(B, L, D), hl2d.reshape(B, L, D)


# ---------------- positional embedding table (glue) ----------------
def sinusoidal_table(num_embeddings, embedding_dim, padding_idx):
    half = embedding_dim // 2
    scale = math.log(10000.0) / (half - 1)
    freqs = jnp.exp(jnp.arange(half, dtype=jnp.float32) * -scale)
    pos = jnp.arange(num_embeddings, dtype=jnp.float32)[:, None] * freqs[None, :]
    emb = jnp.concatenate([jnp.sin(pos), jnp.cos(pos)], axis=1)
    if embedding_dim % 2 == 1:
        emb = jnp.concatenate([emb, jnp.zeros((num_embeddings, 1), jnp.float32)], axis=1)
    emb = emb.at[padding_idx].set(0.0)
    return emb


# ---------------- deterministic parameter init ----------------
def init_params(key):
    keys = jax.random.split(key, 16)
    it = iter(keys)

    def xavier(shape):
        fan_in, fan_out = shape[-2], shape[-1]
        std = math.sqrt(2.0 / (fan_in + fan_out))
        return std * jax.random.normal(next(it), shape, dtype=jnp.float32)

    # Single self_attn deep-copied into every layer -> identical weights, shared here.
    attn = dict(
        wq=xavier((D, D)),            # q_linear   (bias=False)
        wkv=xavier((D, 2 * D)),       # kv_linear  (bias=False)
        wr=xavier((HD, HD)),          # r_linear   (bias=False)
        r_r_bias=xavier((H, HD)),
        r_w_bias=xavier((H, HD)),
    )

    def layer_params():
        return dict(
            n1_g=jnp.ones((D,), jnp.float32), n1_b=jnp.zeros((D,), jnp.float32),
            n2_g=jnp.ones((D,), jnp.float32), n2_b=jnp.zeros((D,), jnp.float32),
            w1=xavier((D, F)), b1=jnp.zeros((F,), jnp.float32),
            w2=xavier((F, D)), b2=jnp.zeros((D,), jnp.float32))

    layers = [layer_params() for _ in range(NUM_LAYERS - 1)]
    two_stream = layer_params()      # h-stream params (l_ffn is unused in forward)
    init_size = 512
    return dict(
        attn=attn, layers=layers, two_stream=two_stream,
        pos_table=sinusoidal_table(init_size + 1, HD, padding_idx=0),
        origin_shift=(init_size + 1) // 2 + 1)   # 257


# ---------------- pure-JAX f32 reference (for correctness cross-check) ----------------
def _ref_ln(x, g, b):
    mu = jnp.mean(x, axis=-1, keepdims=True)
    var = jnp.mean((x - mu) ** 2, axis=-1, keepdims=True)
    return (x - mu) / jnp.sqrt(var + EPS) * g + b


def _ref_attn(q_in, k_in, mask, r, ap):
    q = q_in @ ap["wq"]
    kv = k_in @ ap["wkv"]
    k, v = kv[..., :D], kv[..., D:]
    qh = q.reshape(B, L, H, HD).transpose(0, 2, 1, 3)
    kh = k.reshape(B, L, H, HD).transpose(0, 2, 1, 3)
    vh = v.reshape(B, L, H, HD).transpose(0, 2, 1, 3)
    ac = jnp.einsum("bhqd,bhkd->bhqk", qh + ap["r_r_bias"][None, :, None, :], kh)
    idx = L + jnp.arange(L)[None, :] - jnp.arange(L)[:, None]     # relative position j - i
    rsh = r[idx]                                                  # [L, L, HD]
    bd = jnp.einsum("bhqd,qkd->bhqk", qh + ap["r_w_bias"][None, :, None, :], rsh)
    att = (ac + bd) / SCALE
    att = jnp.where(mask[:, None, None, :] == 0, -jnp.inf, att)
    att = jax.nn.softmax(att, axis=-1)
    out = jnp.einsum("bhqk,bhkd->bhqd", att, vh)
    return out.transpose(0, 2, 1, 3).reshape(B, L, D)


def reference_encoder(hx, lx, mask, params):
    positions = jnp.arange(-L, L) + params["origin_shift"]
    r = params["pos_table"][positions] @ params["attn"]["wr"]
    ap = params["attn"]
    for lp in params["layers"]:
        a = _ref_attn(hx, hx, mask, r, ap)
        hh = _ref_ln(a + hx, lp["n1_g"], lp["n1_b"])
        f = jnp.maximum(hh @ lp["w1"] + lp["b1"], 0.0) @ lp["w2"] + lp["b2"]
        hx = _ref_ln(hh + f, lp["n2_g"], lp["n2_b"])
    ts = params["two_stream"]
    a_hh = _ref_attn(hx, hx, mask, r, ap)
    a_hl = _ref_attn(hx, lx, mask, r, ap)
    hh = _ref_ln(a_hh + hx, ts["n1_g"], ts["n1_b"])
    f = jnp.maximum(hh @ ts["w1"] + ts["b1"], 0.0) @ ts["w2"] + ts["b2"]
    hh = _ref_ln(hh + f, ts["n2_g"], ts["n2_b"])
    return hh, a_hl


if __name__ == "__main__":
    key = jax.random.PRNGKey(0)
    k_h, k_l, k_p = jax.random.split(key, 3)
    h = jax.random.normal(k_h, (B, L, D), dtype=jnp.float32)
    l = jax.random.normal(k_l, (B, L, D), dtype=jnp.float32)
    mask = jnp.ones((B, L), dtype=jnp.int32).at[1, -2:].set(0)   # a couple of padded keys
    params = init_params(k_p)

    hh, hl = transformer_encoder(h, l, mask, params)
    jax.block_until_ready((hh, hl))

    assert hh.shape == (B, L, D) and hl.shape == (B, L, D)
    assert bool(jnp.all(jnp.isfinite(hh))) and bool(jnp.all(jnp.isfinite(hl)))

    # cross-check against a pure-JAX f32 reference (bf16 MXU inputs + approx reciprocal in the
    # kernels -> loose tolerance)
    hh_ref, hl_ref = reference_encoder(h, l, mask, params)
    assert float(jnp.max(jnp.abs(hh - hh_ref))) < 0.2
    assert float(jnp.max(jnp.abs(hl - hl_ref))) < 0.2

    print("KERNEL_OK")
</pallas_src>

<mosaic_0001>
module attributes {stable_mosaic.version = 11 : i64} {
  func.func @_rel_layer_kernel(%arg0: i32, %arg1: memref<8x32xf32, #tpu.memory_space<vmem>>, %arg2: memref<1x1x8xf32, #tpu.memory_space<vmem>>, %arg3: memref<16x8xbf16, #tpu.memory_space<vmem>>, %arg4: memref<32x96xbf16, #tpu.memory_space<vmem>>, %arg5: memref<1x32xf32, #tpu.memory_space<vmem>>, %arg6: memref<1x32xf32, #tpu.memory_space<vmem>>, %arg7: memref<1x32xf32, #tpu.memory_space<vmem>>, %arg8: memref<1x32xf32, #tpu.memory_space<vmem>>, %arg9: memref<32x64xbf16, #tpu.memory_space<vmem>>, %arg10: memref<1x64xf32, #tpu.memory_space<vmem>>, %arg11: memref<64x32xbf16, #tpu.memory_space<vmem>>, %arg12: memref<1x32xf32, #tpu.memory_space<vmem>>, %arg13: memref<1x32xf32, #tpu.memory_space<vmem>>, %arg14: memref<1x32xf32, #tpu.memory_space<vmem>>, %arg15: memref<8x32xf32, #tpu.memory_space<vmem>>) attributes {dimension_semantics = [#tpu.dimension_semantics<parallel>], iteration_bounds = array<i64: 2>, scalar_prefetch = 0 : i64, scratch_operands = 0 : i64, tpu.core_type = #tpu.core_type<tc>, window_params = [{transform_indices = @transform_0, window_bounds = array<i64: 8, 32>}, {transform_indices = @transform_1, window_bounds = array<i64: 1, 1, 8>}, {pipeline_mode = #tpu.pipeline_mode<synchronous>, transform_indices = @transform_2, window_bounds = array<i64: 16, 8>}, {pipeline_mode = #tpu.pipeline_mode<synchronous>, transform_indices = @transform_3, window_bounds = array<i64: 32, 96>}, {pipeline_mode = #tpu.pipeline_mode<synchronous>, transform_indices = @transform_4, window_bounds = array<i64: 1, 32>}, {pipeline_mode = #tpu.pipeline_mode<synchronous>, transform_indices = @transform_5, window_bounds = array<i64: 1, 32>}, {pipeline_mode = #tpu.pipeline_mode<synchronous>, transform_indices = @transform_6, window_bounds = array<i64: 1, 32>}, {pipeline_mode = #tpu.pipeline_mode<synchronous>, transform_indices = @transform_7, window_bounds = array<i64: 1, 32>}, {pipeline_mode = #tpu.pipeline_mode<synchronous>, transform_indices = @transform_8, window_bounds = array<i64: 32, 64>}, {pipeline_mode = #tpu.pipeline_mode<synchronous>, transform_indices = @transform_9, window_bounds = array<i64: 1, 64>}, {pipeline_mode = #tpu.pipeline_mode<synchronous>, transform_indices = @transform_10, window_bounds = array<i64: 64, 32>}, {pipeline_mode = #tpu.pipeline_mode<synchronous>, transform_indices = @transform_11, window_bounds = array<i64: 1, 32>}, {pipeline_mode = #tpu.pipeline_mode<synchronous>, transform_indices = @transform_12, window_bounds = array<i64: 1, 32>}, {pipeline_mode = #tpu.pipeline_mode<synchronous>, transform_indices = @transform_13, window_bounds = array<i64: 1, 32>}, {transform_indices = @transform_14, window_bounds = array<i64: 8, 32>}]} {
    %c0 = arith.constant 0 : index
    %c0_0 = arith.constant 0 : index
    %0 = vector.load %arg1[%c0, %c0_0] : memref<8x32xf32, #tpu.memory_space<vmem>>, vector<8x32xf32>
    %1 = arith.truncf %0 : vector<8x32xf32> to vector<8x32xbf16>
    %c0_1 = arith.constant 0 : index
    %c0_2 = arith.constant 0 : index
    %2 = vector.load %arg4[%c0_1, %c0_2] : memref<32x96xbf16, #tpu.memory_space<vmem>>, vector<32x96xbf16>
    %cst = arith.constant dense<0.000000e+00> : vector<8x96xf32>
    %3 = tpu.matmul %1, %2, %cst {dimension_numbers = #tpu.dot_dimension_numbers<[1], [0], [0], [1], [0, 0, 1, 1], [], []>} : vector<8x32xbf16>, vector<32x96xbf16>, vector<8x96xf32> -> vector<8x96xf32>
    %4 = vector.extract_strided_slice %3 {offsets = [0, 0], sizes = [8, 32], strides = [1, 1]} : vector<8x96xf32> to vector<8x32xf32>
    %5 = vector.extract_strided_slice %3 {offsets = [0, 32], sizes = [8, 32], strides = [1, 1]} : vector<8x96xf32> to vector<8x32xf32>
    %6 = vector.extract_strided_slice %3 {offsets = [0, 64], sizes = [8, 32], strides = [1, 1]} : vector<8x96xf32> to vector<8x32xf32>
    %c0_3 = arith.constant 0 : index
    %c0_4 = arith.constant 0 : index
    %c0_5 = arith.constant 0 : index
    %7 = vector.load %arg2[%c0_3, %c0_4, %c0_5] : memref<1x1x8xf32, #tpu.memory_space<vmem>>, vector<1x1x8xf32>
    %c0_6 = arith.constant 0 : index
    %c0_7 = arith.constant 0 : index
    %8 = vector.load %arg5[%c0_6, %c0_7] : memref<1x32xf32, #tpu.memory_space<vmem>>, vector<1x32xf32>
    %9 = vector.broadcast %8 : vector<1x32xf32> to vector<8x32xf32>
    %10 = arith.addf %4, %9 : vector<8x32xf32>
    %cst_8 = arith.constant 0.353553385 : f32
    %11 = vector.broadcast %cst_8 : f32 to vector<8x32xf32>
    %12 = arith.mulf %10, %11 : vector<8x32xf32>
    %13 = vector.extract_strided_slice %12 {offsets = [0, 0], sizes = [8, 8], strides = [1, 1]} : vector<8x32xf32> to vector<8x8xf32>
    %14 = vector.extract_strided_slice %12 {offsets = [0, 8], sizes = [8, 8], strides = [1, 1]} : vector<8x32xf32> to vector<8x8xf32>
    %15 = vector.extract_strided_slice %12 {offsets = [0, 16], sizes = [8, 8], strides = [1, 1]} : vector<8x32xf32> to vector<8x8xf32>
    %16 = vector.extract_strided_slice %12 {offsets = [0, 24], sizes = [8, 8], strides = [1, 1]} : vector<8x32xf32> to vector<8x8xf32>
    %17 = vector.shape_cast %13 : vector<8x8xf32> to vector<1x8x8xf32>
    %18 = vector.shape_cast %14 : vector<8x8xf32> to vector<1x8x8xf32>
    %19 = vector.shape_cast %15 : vector<8x8xf32> to vector<1x8x8xf32>
    %20 = vector.shape_cast %16 : vector<8x8xf32> to vector<1x8x8xf32>
    %21 = tpu.concatenate %17, %18, %19, %20 in 0 : vector<1x8x8xf32>, vector<1x8x8xf32>, vector<1x8x8xf32>, vector<1x8x8xf32> -> vector<4x8x8xf32>
    %22 = arith.truncf %21 : vector<4x8x8xf32> to vector<4x8x8xbf16>
    %c0_9 = arith.constant 0 : index
    %c0_10 = arith.constant 0 : index
    %23 = vector.load %arg6[%c0_9, %c0_10] : memref<1x32xf32, #tpu.memory_space<vmem>>, vector<1x32xf32>
    %c0_11 = arith.constant 0 : index
    %c0_12 = arith.constant 0 : index
    %24 = vector.load %arg3[%c0_11, %c0_12] : memref<16x8xbf16, #tpu.memory_space<vmem>>, vector<16x8xbf16>
    %25 = vector.broadcast %23 : vector<1x32xf32> to vector<8x32xf32>
    %26 = arith.addf %4, %25 : vector<8x32xf32>
    %cst_13 = arith.constant 0.353553385 : f32
    %27 = vector.broadcast %cst_13 : f32 to vector<8x32xf32>
    %28 = arith.mulf %26, %27 : vector<8x32xf32>
    %29 = vector.extract_strided_slice %28 {offsets = [0, 0], sizes = [8, 8], strides = [1, 1]} : vector<8x32xf32> to vector<8x8xf32>
    %30 = vector.extract_strided_slice %28 {offsets = [0, 8], sizes = [8, 8], strides = [1, 1]} : vector<8x32xf32> to vector<8x8xf32>
    %31 = vector.extract_strided_slice %28 {offsets = [0, 16], sizes = [8, 8], strides = [1, 1]} : vector<8x32xf32> to vector<8x8xf32>
    %32 = vector.extract_strided_slice %28 {offsets = [0, 24], sizes = [8, 8], strides = [1, 1]} : vector<8x32xf32> to vector<8x8xf32>
    %33 = tpu.concatenate %29, %30, %31, %32 in 0 : vector<8x8xf32>, vector<8x8xf32>, vector<8x8xf32>, vector<8x8xf32> -> vector<32x8xf32>
    %34 = arith.truncf %33 : vector<32x8xf32> to vector<32x8xbf16>
    %cst_14 = arith.constant dense<0.000000e+00> : vector<32x16xf32>
    %35 = tpu.matmul %34, %24, %cst_14 {dimension_numbers = #tpu.dot_dimension_numbers<[1], [1], [0], [0], [0, 0, 1, 0], [], []>} : vector<32x8xbf16>, vector<16x8xbf16>, vector<32x16xf32> -> vector<32x16xf32>
    %36 = vector.shape_cast %35 : vector<32x16xf32> to vector<4x8x16xf32>
    %37 = vector.extract_strided_slice %36 {offsets = [0, 0, 8], sizes = [4, 1, 8], strides = [1, 1, 1]} : vector<4x8x16xf32> to vector<4x1x8xf32>
    %38 = vector.extract_strided_slice %36 {offsets = [0, 1, 7], sizes = [4, 1, 8], strides = [1, 1, 1]} : vector<4x8x16xf32> to vector<4x1x8xf32>
    %39 = vector.extract_strided_slice %36 {offsets = [0, 2, 6], sizes = [4, 1, 8], strides = [1, 1, 1]} : vector<4x8x16xf32> to vector<4x1x8xf32>
    %40 = vector.extract_strided_slice %36 {offsets = [0, 3, 5], sizes = [4, 1, 8], strides = [1, 1, 1]} : vector<4x8x16xf32> to vector<4x1x8xf32>
    %41 = vector.extract_strided_slice %36 {offsets = [0, 4, 4], sizes = [4, 1, 8], strides = [1, 1, 1]} : vector<4x8x16xf32> to vector<4x1x8xf32>
    %42 = vector.extract_strided_slice %36 {offsets = [0, 5, 3], sizes = [4, 1, 8], strides = [1, 1, 1]} : vector<4x8x16xf32> to vector<4x1x8xf32>
    %43 = vector.extract_strided_slice %36 {offsets = [0, 6, 2], sizes = [4, 1, 8], strides = [1, 1, 1]} : vector<4x8x16xf32> to vector<4x1x8xf32>
    %44 = vector.extract_strided_slice %36 {offsets = [0, 7, 1], sizes = [4, 1, 8], strides = [1, 1, 1]} : vector<4x8x16xf32> to vector<4x1x8xf32>
    %45 = tpu.concatenate %37, %38, %39, %40, %41, %42, %43, %44 in 1 : vector<4x1x8xf32>, vector<4x1x8xf32>, vector<4x1x8xf32>, vector<4x1x8xf32>, vector<4x1x8xf32>, vector<4x1x8xf32>, vector<4x1x8xf32>, vector<4x1x8xf32> -> vector<4x8x8xf32>
    %46 = vector.extract_strided_slice %5 {offsets = [0, 0], sizes = [8, 8], strides = [1, 1]} : vector<8x32xf32> to vector<8x8xf32>
    %47 = vector.extract_strided_slice %5 {offsets = [0, 8], sizes = [8, 8], strides = [1, 1]} : vector<8x32xf32> to vector<8x8xf32>
    %48 = vector.extract_strided_slice %5 {offsets = [0, 16], sizes = [8, 8], strides = [1, 1]} : vector<8x32xf32> to vector<8x8xf32>
    %49 = vector.extract_strided_slice %5 {offsets = [0, 24], sizes = [8, 8], strides = [1, 1]} : vector<8x32xf32> to vector<8x8xf32>
    %50 = vector.shape_cast %46 : vector<8x8xf32> to vector<1x8x8xf32>
    %51 = vector.shape_cast %47 : vector<8x8xf32> to vector<1x8x8xf32>
    %52 = vector.shape_cast %48 : vector<8x8xf32> to vector<1x8x8xf32>
    %53 = vector.shape_cast %49 : vector<8x8xf32> to vector<1x8x8xf32>
    %54 = tpu.concatenate %50, %51, %52, %53 in 0 : vector<1x8x8xf32>, vector<1x8x8xf32>, vector<1x8x8xf32>, vector<1x8x8xf32> -> vector<4x8x8xf32>
    %55 = arith.truncf %54 : vector<4x8x8xf32> to vector<4x8x8xbf16>
    %56 = vector.extract_strided_slice %6 {offsets = [0, 0], sizes = [8, 8], strides = [1, 1]} : vector<8x32xf32> to vector<8x8xf32>
    %57 = vector.extract_strided_slice %6 {offsets = [0, 8], sizes = [8, 8], strides = [1, 1]} : vector<8x32xf32> to vector<8x8xf32>
    %58 = vector.extract_strided_slice %6 {offsets = [0, 16], sizes = [8, 8], strides = [1, 1]} : vector<8x32xf32> to vector<8x8xf32>
    %59 = vector.extract_strided_slice %6 {offsets = [0, 24], sizes = [8, 8], strides = [1, 1]} : vector<8x32xf32> to vector<8x8xf32>
    %60 = vector.shape_cast %56 : vector<8x8xf32> to vector<1x8x8xf32>
    %61 = vector.shape_cast %57 : vector<8x8xf32> to vector<1x8x8xf32>
    %62 = vector.shape_cast %58 : vector<8x8xf32> to vector<1x8x8xf32>
    %63 = vector.shape_cast %59 : vector<8x8xf32> to vector<1x8x8xf32>
    %64 = tpu.concatenate %60, %61, %62, %63 in 0 : vector<1x8x8xf32>, vector<1x8x8xf32>, vector<1x8x8xf32>, vector<1x8x8xf32> -> vector<4x8x8xf32>
    %65 = arith.truncf %64 : vector<4x8x8xf32> to vector<4x8x8xbf16>
    "tpu.trace_start"() <{level = 10 : i32, message = "hqd,hkd->hqk"}> : () -> ()
    %cst_15 = arith.constant dense<0.000000e+00> : vector<4x8x8xf32>
    %66 = tpu.matmul %22, %55, %cst_15 {dimension_numbers = #tpu.dot_dimension_numbers<[2], [2], [1], [1], [0, 0, 0, 1, 1, 1], [0], [0]>} : vector<4x8x8xbf16>, vector<4x8x8xbf16>, vector<4x8x8xf32> -> vector<4x8x8xf32>
    "tpu.trace_stop"() : () -> ()
    %67 = arith.addf %66, %45 : vector<4x8x8xf32>
    %68 = vector.broadcast %7 : vector<1x1x8xf32> to vector<4x8x8xf32>
    %69 = arith.addf %67, %68 : vector<4x8x8xf32>
    %cst_16 = arith.constant dense<0xFF800000> : vector<4x8xf32>
    %70 = vector.multi_reduction <maximumf>, %69, %cst_16 [2] : vector<4x8x8xf32> to vector<4x8xf32>
    %71 = vector.shape_cast %70 : vector<4x8xf32> to vector<4x8x1xf32>
    %72 = vector.broadcast %71 : vector<4x8x1xf32> to vector<4x8x8xf32>
    %73 = arith.subf %69, %72 : vector<4x8x8xf32>
    %74 = math.exp %73 : vector<4x8x8xf32>
    %cst_17 = arith.constant dense<0.000000e+00> : vector<4x8xf32>
    %75 = vector.multi_reduction <add>, %74, %cst_17 [2] : vector<4x8x8xf32> to vector<4x8xf32>
    %76 = vector.shape_cast %75 : vector<4x8xf32> to vector<4x8x1xf32>
    %77 = arith.truncf %74 : vector<4x8x8xf32> to vector<4x8x8xbf16>
    "tpu.trace_start"() <{level = 10 : i32, message = "hqk,hkd->hqd"}> : () -> ()
    %cst_18 = arith.constant dense<0.000000e+00> : vector<4x8x8xf32>
    %78 = tpu.matmul %77, %65, %cst_18 {dimension_numbers = #tpu.dot_dimension_numbers<[2], [1], [1], [2], [0, 0, 0, 1, 1, 2], [0], [0]>} : vector<4x8x8xbf16>, vector<4x8x8xbf16>, vector<4x8x8xf32> -> vector<4x8x8xf32>
    "tpu.trace_stop"() : () -> ()
    %79 = tpu.reciprocal %76 {approx = true} : vector<4x8x1xf32> -> vector<4x8x1xf32>
    %80 = vector.broadcast %79 : vector<4x8x1xf32> to vector<4x8x8xf32>
    %81 = arith.mulf %78, %80 : vector<4x8x8xf32>
    %82 = vector.extract_strided_slice %81 {offsets = [0, 0, 0], sizes = [1, 8, 8], strides = [1, 1, 1]} : vector<4x8x8xf32> to vector<1x8x8xf32>
    %83 = vector.shape_cast %82 : vector<1x8x8xf32> to vector<8x8xf32>
    %84 = vector.extract_strided_slice %81 {offsets = [1, 0, 0], sizes = [1, 8, 8], strides = [1, 1, 1]} : vector<4x8x8xf32> to vector<1x8x8xf32>
    %85 = vector.shape_cast %84 : vector<1x8x8xf32> to vector<8x8xf32>
    %86 = vector.extract_strided_slice %81 {offsets = [2, 0, 0], sizes = [1, 8, 8], strides = [1, 1, 1]} : vector<4x8x8xf32> to vector<1x8x8xf32>
    %87 = vector.shape_cast %86 : vector<1x8x8xf32> to vector<8x8xf32>
    %88 = vector.extract_strided_slice %81 {offsets = [3, 0, 0], sizes = [1, 8, 8], strides = [1, 1, 1]} : vector<4x8x8xf32> to vector<1x8x8xf32>
    %89 = vector.shape_cast %88 : vector<1x8x8xf32> to vector<8x8xf32>
    %90 = tpu.concatenate %83, %85, %87, %89 in 1 : vector<8x8xf32>, vector<8x8xf32>, vector<8x8xf32>, vector<8x8xf32> -> vector<8x32xf32>
    %c0_19 = arith.constant 0 : index
    %c0_20 = arith.constant 0 : index
    %91 = vector.load %arg7[%c0_19, %c0_20] : memref<1x32xf32, #tpu.memory_space<vmem>>, vector<1x32xf32>
    %c0_21 = arith.constant 0 : index
    %c0_22 = arith.constant 0 : index
    %92 = vector.load %arg8[%c0_21, %c0_22] : memref<1x32xf32, #tpu.memory_space<vmem>>, vector<1x32xf32>
    %93 = arith.addf %90, %0 : vector<8x32xf32>
    %cst_23 = arith.constant dense<0.000000e+00> : vector<8xf32>
    %94 = vector.multi_reduction <add>, %93, %cst_23 [1] : vector<8x32xf32> to vector<8xf32>
    %95 = vector.shape_cast %94 : vector<8xf32> to vector<8x1xf32>
    %cst_24 = arith.constant 3.200000e+01 : f32
    %96 = vector.broadcast %cst_24 : f32 to vector<8x1xf32>
    %97 = arith.divf %95, %96 : vector<8x1xf32>
    %98 = vector.broadcast %97 : vector<8x1xf32> to vector<8x32xf32>
    %99 = arith.subf %93, %98 : vector<8x32xf32>
    %100 = arith.mulf %99, %99 : vector<8x32xf32>
    %cst_25 = arith.constant dense<0.000000e+00> : vector<8xf32>
    %101 = vector.multi_reduction <add>, %100, %cst_25 [1] : vector<8x32xf32> to vector<8xf32>
    %102 = vector.shape_cast %101 : vector<8xf32> to vector<8x1xf32>
    %cst_26 = arith.constant 3.200000e+01 : f32
    %103 = vector.broadcast %cst_26 : f32 to vector<8x1xf32>
    %104 = arith.divf %102, %103 : vector<8x1xf32>
    %105 = vector.broadcast %97 : vector<8x1xf32> to vector<8x32xf32>
    %106 = arith.subf %93, %105 : vector<8x32xf32>
    %cst_27 = arith.constant 9.99999996E-13 : f32
    %107 = vector.broadcast %cst_27 : f32 to vector<8x1xf32>
    %108 = arith.addf %104, %107 : vector<8x1xf32>
    %109 = math.rsqrt %108 : vector<8x1xf32>
    %110 = vector.broadcast %109 : vector<8x1xf32> to vector<8x32xf32>
    %111 = arith.mulf %106, %110 : vector<8x32xf32>
    %112 = vector.broadcast %91 : vector<1x32xf32> to vector<8x32xf32>
    %113 = arith.mulf %111, %112 : vector<8x32xf32>
    %114 = vector.broadcast %92 : vector<1x32xf32> to vector<8x32xf32>
    %115 = arith.addf %113, %114 : vector<8x32xf32>
    %c0_28 = arith.constant 0 : index
    %c0_29 = arith.constant 0 : index
    %116 = vector.load %arg9[%c0_28, %c0_29] : memref<32x64xbf16, #tpu.memory_space<vmem>>, vector<32x64xbf16>
    %c0_30 = arith.constant 0 : index
    %c0_31 = arith.constant 0 : index
    %117 = vector.load %arg10[%c0_30, %c0_31] : memref<1x64xf32, #tpu.memory_space<vmem>>, vector<1x64xf32>
    %c0_32 = arith.constant 0 : index
    %c0_33 = arith.constant 0 : index
    %118 = vector.load %arg11[%c0_32, %c0_33] : memref<64x32xbf16, #tpu.memory_space<vmem>>, vector<64x32xbf16>
    %c0_34 = arith.constant 0 : index
    %c0_35 = arith.constant 0 : index
    %119 = vector.load %arg12[%c0_34, %c0_35] : memref<1x32xf32, #tpu.memory_space<vmem>>, vector<1x32xf32>
    %120 = arith.truncf %115 : vector<8x32xf32> to vector<8x32xbf16>
    %cst_36 = arith.constant dense<0.000000e+00> : vector<8x64xf32>
    %121 = tpu.matmul %120, %116, %cst_36 {dimension_numbers = #tpu.dot_dimension_numbers<[1], [0], [0], [1], [0, 0, 1, 1], [], []>} : vector<8x32xbf16>, vector<32x64xbf16>, vector<8x64xf32> -> vector<8x64xf32>
    %122 = vector.broadcast %117 : vector<1x64xf32> to vector<8x64xf32>
    %123 = arith.addf %121, %122 : vector<8x64xf32>
    %cst_37 = arith.constant 0.000000e+00 : f32
    %124 = vector.broadcast %cst_37 : f32 to vector<8x64xf32>
    %125 = arith.maximumf %123, %124 : vector<8x64xf32>
    %126 = arith.truncf %125 : vector<8x64xf32> to vector<8x64xbf16>
    %cst_38 = arith.constant dense<0.000000e+00> : vector<8x32xf32>
    %127 = tpu.matmul %126, %118, %cst_38 {dimension_numbers = #tpu.dot_dimension_numbers<[1], [0], [0], [1], [0, 0, 1, 1], [], []>} : vector<8x64xbf16>, vector<64x32xbf16>, vector<8x32xf32> -> vector<8x32xf32>
    %128 = vector.broadcast %119 : vector<1x32xf32> to vector<8x32xf32>
    %129 = arith.addf %127, %128 : vector<8x32xf32>
    %c0_39 = arith.constant 0 : index
    %c0_40 = arith.constant 0 : index
    %130 = vector.load %arg13[%c0_39, %c0_40] : memref<1x32xf32, #tpu.memory_space<vmem>>, vector<1x32xf32>
    %c0_41 = arith.constant 0 : index
    %c0_42 = arith.constant 0 : index
    %131 = vector.load %arg14[%c0_41, %c0_42] : memref<1x32xf32, #tpu.memory_space<vmem>>, vector<1x32xf32>
    %132 = arith.addf %129, %115 : vector<8x32xf32>
    %cst_43 = arith.constant dense<0.000000e+00> : vector<8xf32>
    %133 = vector.multi_reduction <add>, %132, %cst_43 [1] : vector<8x32xf32> to vector<8xf32>
    %134 = vector.shape_cast %133 : vector<8xf32> to vector<8x1xf32>
    %cst_44 = arith.constant 3.200000e+01 : f32
    %135 = vector.broadcast %cst_44 : f32 to vector<8x1xf32>
    %136 = arith.divf %134, %135 : vector<8x1xf32>
    %137 = vector.broadcast %136 : vector<8x1xf32> to vector<8x32xf32>
    %138 = arith.subf %132, %137 : vector<8x32xf32>
    %139 = arith.mulf %138, %138 : vector<8x32xf32>
    %cst_45 = arith.constant dense<0.000000e+00> : vector<8xf32>
    %140 = vector.multi_reduction <add>, %139, %cst_45 [1] : vector<8x32xf32> to vector<8xf32>
    %141 = vector.shape_cast %140 : vector<8xf32> to vector<8x1xf32>
    %cst_46 = arith.constant 3.200000e+01 : f32
    %142 = vector.broadcast %cst_46 : f32 to vector<8x1xf32>
    %143 = arith.divf %141, %142 : vector<8x1xf32>
    %144 = vector.broadcast %136 : vector<8x1xf32> to vector<8x32xf32>
    %145 = arith.subf %132, %144 : vector<8x32xf32>
    %cst_47 = arith.constant 9.99999996E-13 : f32
    %146 = vector.broadcast %cst_47 : f32 to vector<8x1xf32>
    %147 = arith.addf %143, %146 : vector<8x1xf32>
    %148 = math.rsqrt %147 : vector<8x1xf32>
    %149 = vector.broadcast %148 : vector<8x1xf32> to vector<8x32xf32>
    %150 = arith.mulf %145, %149 : vector<8x32xf32>
    %151 = vector.broadcast %130 : vector<1x32xf32> to vector<8x32xf32>
    %152 = arith.mulf %150, %151 : vector<8x32xf32>
    %153 = vector.broadcast %131 : vector<1x32xf32> to vector<8x32xf32>
    %154 = arith.addf %152, %153 : vector<8x32xf32>
    %c0_48 = arith.constant 0 : index
    %c0_49 = arith.constant 0 : index
    %155 = vector.load %arg15[%c0_48, %c0_49] : memref<8x32xf32, #tpu.memory_space<vmem>>, vector<8x32xf32>
    tpu.vector_store %arg15[%c0_48, %c0_49], %154 {strides = array<i32>} : memref<8x32xf32, #tpu.memory_space<vmem>>, vector<8x32xf32>,
    return
  }
  func.func @transform_0(%arg0: i32) -> (i32, i32) {
    %c0_i32 = arith.constant 0 : i32
    %c0_i32_0 = arith.constant 0 : i32
    return %arg0, %c0_i32 : i32, i32
  }
  func.func @transform_1(%arg0: i32) -> (i32, i32, i32) {
    %c0_i32 = arith.constant 0 : i32
    %c0_i32_0 = arith.constant 0 : i32
    %c0_i32_1 = arith.constant 0 : i32
    return %arg0, %c0_i32, %c0_i32_0 : i32, i32, i32
  }
  func.func @transform_2(%arg0: i32) -> (i32, i32) {
    %c0_i32 = arith.constant 0 : i32
    %c0_i32_0 = arith.constant 0 : i32
    %c0_i32_1 = arith.constant 0 : i32
    return %c0_i32, %c0_i32_0 : i32, i32
  }
  func.func @transform_3(%arg0: i32) -> (i32, i32) {
    %c0_i32 = arith.constant 0 : i32
    %c0_i32_0 = arith.constant 0 : i32
    %c0_i32_1 = arith.constant 0 : i32
    return %c0_i32, %c0_i32_0 : i32, i32
  }
  func.func @transform_4(%arg0: i32) -> (i32, i32) {
    %c0_i32 = arith.constant 0 : i32
    %c0_i32_0 = arith.constant 0 : i32
    %c0_i32_1 = arith.constant 0 : i32
    return %c0_i32, %c0_i32_0 : i32, i32
  }
  func.func @transform_5(%arg0: i32) -> (i32, i32) {
    %c0_i32 = arith.constant 0 : i32
    %c0_i32_0 = arith.constant 0 : i32
    %c0_i32_1 = arith.constant 0 : i32
    return %c0_i32, %c0_i32_0 : i32, i32
  }
  func.func @transform_6(%arg0: i32) -> (i32, i32) {
    %c0_i32 = arith.constant 0 : i32
    %c0_i32_0 = arith.constant 0 : i32
    %c0_i32_1 = arith.constant 0 : i32
    return %c0_i32, %c0_i32_0 : i32, i32
  }
  func.func @transform_7(%arg0: i32) -> (i32, i32) {
    %c0_i32 = arith.constant 0 : i32
    %c0_i32_0 = arith.constant 0 : i32
    %c0_i32_1 = arith.constant 0 : i32
    return %c0_i32, %c0_i32_0 : i32, i32
  }
  func.func @transform_8(%arg0: i32) -> (i32, i32) {
    %c0_i32 = arith.constant 0 : i32
    %c0_i32_0 = arith.constant 0 : i32
    %c0_i32_1 = arith.constant 0 : i32
    return %c0_i32, %c0_i32_0 : i32, i32
  }
  func.func @transform_9(%arg0: i32) -> (i32, i32) {
    %c0_i32 = arith.constant 0 : i32
    %c0_i32_0 = arith.constant 0 : i32
    %c0_i32_1 = arith.constant 0 : i32
    return %c0_i32, %c0_i32_0 : i32, i32
  }
  func.func @transform_10(%arg0: i32) -> (i32, i32) {
    %c0_i32 = arith.constant 0 : i32
    %c0_i32_0 = arith.constant 0 : i32
    %c0_i32_1 = arith.constant 0 : i32
    return %c0_i32, %c0_i32_0 : i32, i32
  }
  func.func @transform_11(%arg0: i32) -> (i32, i32) {
    %c0_i32 = arith.constant 0 : i32
    %c0_i32_0 = arith.constant 0 : i32
    %c0_i32_1 = arith.constant 0 : i32
    return %c0_i32, %c0_i32_0 : i32, i32
  }
  func.func @transform_12(%arg0: i32) -> (i32, i32) {
    %c0_i32 = arith.constant 0 : i32
    %c0_i32_0 = arith.constant 0 : i32
    %c0_i32_1 = arith.constant 0 : i32
    return %c0_i32, %c0_i32_0 : i32, i32
  }
  func.func @transform_13(%arg0: i32) -> (i32, i32) {
    %c0_i32 = arith.constant 0 : i32
    %c0_i32_0 = arith.constant 0 : i32
    %c0_i32_1 = arith.constant 0 : i32
    return %c0_i32, %c0_i32_0 : i32, i32
  }
  func.func @transform_14(%arg0: i32) -> (i32, i32) {
    %c0_i32 = arith.constant 0 : i32
    %c0_i32_0 = arith.constant 0 : i32
    return %arg0, %c0_i32 : i32, i32
  }
}

</mosaic_0001>

<llo_original>
// kernel: tpu_custom_call.1
$region0: #{tpu_custom_call.1}
  #allocation0 [shape = 'u32[]', space=smem, size = 0x4, offset = 0x4, fixed_abs, tag = 'smem constant byte address 0x4 - core index']
  #allocation1 [shape = 'u32[144,128]{1,0:T(1,128)}', space=vmem, size = 0x12000, scoped, tag = 'internal scratch']
  %s0 = inlined_call_operand.vmem [shape: f32[16,32], index: 0, kind: input, shape index: {}]
  %s1 = inlined_call_operand.vmem [shape: f32[2,1,8], index: 1, kind: input, shape index: {}]
  %s2 = inlined_call_operand.vmem [shape: bf16[16,8], index: 2, kind: input, shape index: {}]
  %s3 = inlined_call_operand.vmem [shape: bf16[32,96], index: 3, kind: input, shape index: {}]
  %s4 = inlined_call_operand.vmem [shape: f32[1,32], index: 4, kind: input, shape index: {}]
  %s5 = inlined_call_operand.vmem [shape: f32[1,32], index: 5, kind: input, shape index: {}]
  %s6 = inlined_call_operand.vmem [shape: f32[1,32], index: 6, kind: input, shape index: {}]
  %s7 = inlined_call_operand.vmem [shape: f32[1,32], index: 7, kind: input, shape index: {}]
  %s8 = inlined_call_operand.vmem [shape: bf16[32,64], index: 8, kind: input, shape index: {}]
  %s9 = inlined_call_operand.vmem [shape: f32[1,64], index: 9, kind: input, shape index: {}]
  %s10 = inlined_call_operand.vmem [shape: bf16[64,32], index: 10, kind: input, shape index: {}]
  %s11 = inlined_call_operand.vmem [shape: f32[1,32], index: 11, kind: input, shape index: {}]
  %s12 = inlined_call_operand.vmem [shape: f32[1,32], index: 12, kind: input, shape index: {}]
  %s13 = inlined_call_operand.vmem [shape: f32[1,32], index: 13, kind: input, shape index: {}]
  %s14 = inlined_call_operand.hbm [shape: f32[16,32], index: 14, kind: output, shape index: {}]
  %s15 = sld [smem:[#allocation0]]
  $region89: #{tpu_custom_call.1} parent=0
    _
  %s17 = ssub.s32 1, %s15
  %s18 = scalar_select 0, %s17, %s15
  $region1: #{tpu_custom_call.1} parent=0
    #allocation2 [shape = 'u8[8192]{0}', space=vmem, size = 0x2000, scoped, tag = 'output window, operand 0']
    #allocation3 [shape = 's32[2]{0}', space=sflag, size = 0x8, scoped, tag = 'scoped memory for tpu_custom_call.1']
    %19 = vsyncpa [#allocation3], 0
    %s20 = scalar_lea.sflag [#allocation3], 1
    %21 = vsyncpa %s20, 0
    loop: start=0, step=1, limit=4
    $region2: #{tpu_custom_call.1} parent=1 // loop_pre_header
      _
    $region3: #{tpu_custom_call.1} parent=1 // loop_header
      %s23 = sphi 0, %s27
      %p24 = scmp.ge.s32.totalorder %s23, 4
      %s33 = sphi 0, %s35
      %s36 = sphi 0, %s33
      %s37 = sphi 0, %s36
      %s53 = sphi 0, %s37
      %s59 = sphi 0, %s61
      %s62 = sphi 0, %s59
      %s63 = sphi 0, %s62
      %s79 = sphi 0, %s63
      %s83 = sphi 0, %s83
      %s85 = sphi 0, %s83
      %s86 = sphi 0, %s85
      %s100 = sphi 0, %s86
      %s104 = sphi 0, %s104
      %s106 = sphi 0, %s104
      %s107 = sphi 0, %s106
      %s121 = sphi 0, %s107
      %s125 = sphi 0, %s125
      %s127 = sphi 0, %s125
      %s128 = sphi 0, %s127
      %s142 = sphi 0, %s128
      %s146 = sphi 0, %s146
      %s148 = sphi 0, %s146
      %s149 = sphi 0, %s148
      %s163 = sphi 0, %s149
      %s167 = sphi 0, %s167
      %s169 = sphi 0, %s167
      %s170 = sphi 0, %s169
      %s184 = sphi 0, %s170
      %s188 = sphi 0, %s188
      %s190 = sphi 0, %s188
      %s191 = sphi 0, %s190
      %s205 = sphi 0, %s191
      %s209 = sphi 0, %s209
      %s211 = sphi 0, %s209
      %s212 = sphi 0, %s211
      %s226 = sphi 0, %s212
      %s230 = sphi 0, %s230
      %s232 = sphi 0, %s230
      %s233 = sphi 0, %s232
      %s247 = sphi 0, %s233
      %s251 = sphi 0, %s251
      %s253 = sphi 0, %s251
      %s254 = sphi 0, %s253
      %s268 = sphi 0, %s254
      %s272 = sphi 0, %s272
      %s274 = sphi 0, %s272
      %s275 = sphi 0, %s274
      %s289 = sphi 0, %s275
      %s293 = sphi 0, %s293
      %s295 = sphi 0, %s293
      %s296 = sphi 0, %s295
      %s310 = sphi 0, %s296
      %s314 = sphi 0, %s314
      %s316 = sphi 0, %s314
      %s317 = sphi 0, %s316
      %s331 = sphi 0, %s317
      %s337 = sphi 0, %s339
      %s340 = sphi 0, %s337
      %s341 = sphi 0, %s340
      %s357 = sphi 0, %s341
    $region4: #{tpu_custom_call.1} parent=1 // loop_header_branch
      %26 = sbr.rel (%p24) target = $region8
    $region5: #{tpu_custom_call.1} parent=1 // loop_body
      %s28 = ssub.s32 %s23, 1
      %s29 = ssub.s32 %s23, 2
      %s30 = sadd.s32 %s23, 1
      %s31 = ssub.s32 %s23, %s30
      %p32 = scmp.eq.s32.totalorder %s31, 0
      %s34 = sadd.s32 %s33, 1
      %s35 = scalar_select %p32, %s33, %s34
      %p38 = pneg %p32
      %p39 = scmp.eq.s32.totalorder %s23, 1
      %p40 = por %p38, %p39
      %p41 = scmp.ne.s32.totalorder %s33, %s36
      %p42 = scmp.eq.s32.totalorder %s23, 0
      %p43 = por %p41, %p42
      %p44 = scmp.ne.s32.totalorder %s33, %s36
      %p45 = scmp.eq.s32.totalorder %s28, 1
      %p46 = por %p44, %p45
      %p47 = scmp.ne.s32.totalorder %s36, %s37
      %p48 = scmp.eq.s32.totalorder %s28, 0
      %p49 = por %p47, %p48
      %p50 = scmp.ne.s32.totalorder %s36, %s37
      %p51 = scmp.eq.s32.totalorder %s29, 1
      %p52 = por %p50, %p51
      %p54 = scmp.ne.s32.totalorder %s37, %s53
      %p55 = scmp.eq.s32.totalorder %s29, 0
      %p56 = por %p54, %p55
      %s57 = ssub.s32 %s23, %s30
      %p58 = scmp.eq.s32.totalorder %s57, 0
      %s60 = sadd.s32 %s59, 1
      %s61 = scalar_select %p58, %s59, %s60
      %p64 = pneg %p58
      %p65 = scmp.eq.s32.totalorder %s23, 1
      %p66 = por %p64, %p65
      %p67 = scmp.ne.s32.totalorder %s59, %s62
      %p68 = scmp.eq.s32.totalorder %s23, 0
      %p69 = por %p67, %p68
      %p70 = scmp.ne.s32.totalorder %s59, %s62
      %p71 = scmp.eq.s32.totalorder %s28, 1
      %p72 = por %p70, %p71
      %p73 = scmp.ne.s32.totalorder %s62, %s63
      %p74 = scmp.eq.s32.totalorder %s28, 0
      %p75 = por %p73, %p74
      %p76 = scmp.ne.s32.totalorder %s62, %s63
      %p77 = scmp.eq.s32.totalorder %s29, 1
      %p78 = por %p76, %p77
      %p80 = scmp.ne.s32.totalorder %s63, %s79
      %p81 = scmp.eq.s32.totalorder %s29, 0
      %p82 = por %p80, %p81
      %s84 = sadd.s32 %s83, 1
      %p87 = scmp.eq.s32.totalorder %s23, 1
      %p88 = scmp.ne.s32.totalorder %s83, %s85
      %p89 = scmp.eq.s32.totalorder %s23, 0
      %p90 = por %p88, %p89
      %p91 = scmp.ne.s32.totalorder %s83, %s85
      %p92 = scmp.eq.s32.totalorder %s28, 1
      %p93 = por %p91, %p92
      %p94 = scmp.ne.s32.totalorder %s85, %s86
      %p95 = scmp.eq.s32.totalorder %s28, 0
      %p96 = por %p94, %p95
      %p97 = scmp.ne.s32.totalorder %s85, %s86
      %p98 = scmp.eq.s32.totalorder %s29, 1
      %p99 = por %p97, %p98
      %p101 = scmp.ne.s32.totalorder %s86, %s100
      %p102 = scmp.eq.s32.totalorder %s29, 0
      %p103 = por %p101, %p102
      %s105 = sadd.s32 %s104, 1
      %p108 = scmp.eq.s32.totalorder %s23, 1
      %p109 = scmp.ne.s32.totalorder %s104, %s106
      %p110 = scmp.eq.s32.totalorder %s23, 0
      %p111 = por %p109, %p110
      %p112 = scmp.ne.s32.totalorder %s104, %s106
      %p113 = scmp.eq.s32.totalorder %s28, 1
      %p114 = por %p112, %p113
      %p115 = scmp.ne.s32.totalorder %s106, %s107
      %p116 = scmp.eq.s32.totalorder %s28, 0
      %p117 = por %p115, %p116
      %p118 = scmp.ne.s32.totalorder %s106, %s107
      %p119 = scmp.eq.s32.totalorder %s29, 1
      %p120 = por %p118, %p119
      %p122 = scmp.ne.s32.totalorder %s107, %s121
      %p123 = scmp.eq.s32.totalorder %s29, 0
      %p124 = por %p122, %p123
      %s126 = sadd.s32 %s125, 1
      %p129 = scmp.eq.s32.totalorder %s23, 1
      %p130 = scmp.ne.s32.totalorder %s125, %s127
      %p131 = scmp.eq.s32.totalorder %s23, 0
      %p132 = por %p130, %p131
      %p133 = scmp.ne.s32.totalorder %s125, %s127
      %p134 = scmp.eq.s32.totalorder %s28, 1
      %p135 = por %p133, %p134
      %p136 = scmp.ne.s32.totalorder %s127, %s128
      %p137 = scmp.eq.s32.totalorder %s28, 0
      %p138 = por %p136, %p137
      %p139 = scmp.ne.s32.totalorder %s127, %s128
      %p140 = scmp.eq.s32.totalorder %s29, 1
      %p141 = por %p139, %p140
      %p143 = scmp.ne.s32.totalorder %s128, %s142
      %p144 = scmp.eq.s32.totalorder %s29, 0
      %p145 = por %p143, %p144
      %s147 = sadd.s32 %s146, 1
      %p150 = scmp.eq.s32.totalorder %s23, 1
      %p151 = scmp.ne.s32.totalorder %s146, %s148
      %p152 = scmp.eq.s32.totalorder %s23, 0
      %p153 = por %p151, %p152
      %p154 = scmp.ne.s32.totalorder %s146, %s148
      %p155 = scmp.eq.s32.totalorder %s28, 1
      %p156 = por %p154, %p155
      %p157 = scmp.ne.s32.totalorder %s148, %s149
      %p158 = scmp.eq.s32.totalorder %s28, 0
      %p159 = por %p157, %p158
      %p160 = scmp.ne.s32.totalorder %s148, %s149
      %p161 = scmp.eq.s32.totalorder %s29, 1
      %p162 = por %p160, %p161
      %p164 = scmp.ne.s32.totalorder %s149, %s163
      %p165 = scmp.eq.s32.totalorder %s29, 0
      %p166 = por %p164, %p165
      %s168 = sadd.s32 %s167, 1
      %p171 = scmp.eq.s32.totalorder %s23, 1
      %p172 = scmp.ne.s32.totalorder %s167, %s169
      %p173 = scmp.eq.s32.totalorder %s23, 0
      %p174 = por %p172, %p173
      %p175 = scmp.ne.s32.totalorder %s167, %s169
      %p176 = scmp.eq.s32.totalorder %s28, 1
      %p177 = por %p175, %p176
      %p178 = scmp.ne.s32.totalorder %s169, %s170
      %p179 = scmp.eq.s32.totalorder %s28, 0
      %p180 = por %p178, %p179
      %p181 = scmp.ne.s32.totalorder %s169, %s170
      %p182 = scmp.eq.s32.totalorder %s29, 1
      %p183 = por %p181, %p182
      %p185 = scmp.ne.s32.totalorder %s170, %s184
      %p186 = scmp.eq.s32.totalorder %s29, 0
      %p187 = por %p185, %p186
      %s189 = sadd.s32 %s188, 1
      %p192 = scmp.eq.s32.totalorder %s23, 1
      %p193 = scmp.ne.s32.totalorder %s188, %s190
      %p194 = scmp.eq.s32.totalorder %s23, 0
      %p195 = por %p193, %p194
      %p196 = scmp.ne.s32.totalorder %s188, %s190
      %p197 = scmp.eq.s32.totalorder %s28, 1
      %p198 = por %p196, %p197
      %p199 = scmp.ne.s32.totalorder %s190, %s191
      %p200 = scmp.eq.s32.totalorder %s28, 0
      %p201 = por %p199, %p200
      %p202 = scmp.ne.s32.totalorder %s190, %s191
      %p203 = scmp.eq.s32.totalorder %s29, 1
      %p204 = por %p202, %p203
      %p206 = scmp.ne.s32.totalorder %s191, %s205
      %p207 = scmp.eq.s32.totalorder %s29, 0
      %p208 = por %p206, %p207
      %s210 = sadd.s32 %s209, 1
      %p213 = scmp.eq.s32.totalorder %s23, 1
      %p214 = scmp.ne.s32.totalorder %s209, %s211
      %p215 = scmp.eq.s32.totalorder %s23, 0
      %p216 = por %p214, %p215
      %p217 = scmp.ne.s32.totalorder %s209, %s211
      %p218 = scmp.eq.s32.totalorder %s28, 1
      %p219 = por %p217, %p218
      %p220 = scmp.ne.s32.totalorder %s211, %s212
      %p221 = scmp.eq.s32.totalorder %s28, 0
      %p222 = por %p220, %p221
      %p223 = scmp.ne.s32.totalorder %s211, %s212
      %p224 = scmp.eq.s32.totalorder %s29, 1
      %p225 = por %p223, %p224
      %p227 = scmp.ne.s32.totalorder %s212, %s226
      %p228 = scmp.eq.s32.totalorder %s29, 0
      %p229 = por %p227, %p228
      %s231 = sadd.s32 %s230, 1
      %p234 = scmp.eq.s32.totalorder %s23, 1
      %p235 = scmp.ne.s32.totalorder %s230, %s232
      %p236 = scmp.eq.s32.totalorder %s23, 0
      %p237 = por %p235, %p236
      %p238 = scmp.ne.s32.totalorder %s230, %s232
      %p239 = scmp.eq.s32.totalorder %s28, 1
      %p240 = por %p238, %p239
      %p241 = scmp.ne.s32.totalorder %s232, %s233
      %p242 = scmp.eq.s32.totalorder %s28, 0
      %p243 = por %p241, %p242
      %p244 = scmp.ne.s32.totalorder %s232, %s233
      %p245 = scmp.eq.s32.totalorder %s29, 1
      %p246 = por %p244, %p245
      %p248 = scmp.ne.s32.totalorder %s233, %s247
      %p249 = scmp.eq.s32.totalorder %s29, 0
      %p250 = por %p248, %p249
      %s252 = sadd.s32 %s251, 1
      %p255 = scmp.eq.s32.totalorder %s23, 1
      %p256 = scmp.ne.s32.totalorder %s251, %s253
      %p257 = scmp.eq.s32.totalorder %s23, 0
      %p258 = por %p256, %p257
      %p259 = scmp.ne.s32.totalorder %s251, %s253
      %p260 = scmp.eq.s32.totalorder %s28, 1
      %p261 = por %p259, %p260
      %p262 = scmp.ne.s32.totalorder %s253, %s254
      %p263 = scmp.eq.s32.totalorder %s28, 0
      %p264 = por %p262, %p263
      %p265 = scmp.ne.s32.totalorder %s253, %s254
      %p266 = scmp.eq.s32.totalorder %s29, 1
      %p267 = por %p265, %p266
      %p269 = scmp.ne.s32.totalorder %s254, %s268
      %p270 = scmp.eq.s32.totalorder %s29, 0
      %p271 = por %p269, %p270
      %s273 = sadd.s32 %s272, 1
      %p276 = scmp.eq.s32.totalorder %s23, 1
      %p277 = scmp.ne.s32.totalorder %s272, %s274
      %p278 = scmp.eq.s32.totalorder %s23, 0
      %p279 = por %p277, %p278
      %p280 = scmp.ne.s32.totalorder %s272, %s274
      %p281 = scmp.eq.s32.totalorder %s28, 1
      %p282 = por %p280, %p281
      %p283 = scmp.ne.s32.totalorder %s274, %s275
      %p284 = scmp.eq.s32.totalorder %s28, 0
      %p285 = por %p283, %p284
      %p286 = scmp.ne.s32.totalorder %s274, %s275
      %p287 = scmp.eq.s32.totalorder %s29, 1
      %p288 = por %p286, %p287
      %p290 = scmp.ne.s32.totalorder %s275, %s289
      %p291 = scmp.eq.s32.totalorder %s29, 0
      %p292 = por %p290, %p291
      %s294 = sadd.s32 %s293, 1
      %p297 = scmp.eq.s32.totalorder %s23, 1
      %p298 = scmp.ne.s32.totalorder %s293, %s295
      %p299 = scmp.eq.s32.totalorder %s23, 0
      %p300 = por %p298, %p299
      %p301 = scmp.ne.s32.totalorder %s293, %s295
      %p302 = scmp.eq.s32.totalorder %s28, 1
      %p303 = por %p301, %p302
      %p304 = scmp.ne.s32.totalorder %s295, %s296
      %p305 = scmp.eq.s32.totalorder %s28, 0
      %p306 = por %p304, %p305
      %p307 = scmp.ne.s32.totalorder %s295, %s296
      %p308 = scmp.eq.s32.totalorder %s29, 1
      %p309 = por %p307, %p308
      %p311 = scmp.ne.s32.totalorder %s296, %s310
      %p312 = scmp.eq.s32.totalorder %s29, 0
      %p313 = por %p311, %p312
      %s315 = sadd.s32 %s314, 1
      %p318 = scmp.eq.s32.totalorder %s23, 1
      %p319 = scmp.ne.s32.totalorder %s314, %s316
      %p320 = scmp.eq.s32.totalorder %s23, 0
      %p321 = por %p319, %p320
      %p322 = scmp.ne.s32.totalorder %s314, %s316
      %p323 = scmp.eq.s32.totalorder %s28, 1
      %p324 = por %p322, %p323
      %p325 = scmp.ne.s32.totalorder %s316, %s317
      %p326 = scmp.eq.s32.totalorder %s28, 0
      %p327 = por %p325, %p326
      %p328 = scmp.ne.s32.totalorder %s316, %s317
      %p329 = scmp.eq.s32.totalorder %s29, 1
      %p330 = por %p328, %p329
      %p332 = scmp.ne.s32.totalorder %s317, %s331
      %p333 = scmp.eq.s32.totalorder %s29, 0
      %p334 = por %p332, %p333
      %s335 = ssub.s32 %s23, %s30
      %p336 = scmp.eq.s32.totalorder %s335, 0
      %s338 = sadd.s32 %s337, 1
      %s339 = scalar_select %p336, %s337, %s338
      %p342 = pneg %p336
      %p343 = scmp.eq.s32.totalorder %s23, 1
      %p344 = por %p342, %p343
      %p345 = scmp.ne.s32.totalorder %s337, %s340
      %p346 = scmp.eq.s32.totalorder %s23, 0
      %p347 = por %p345, %p346
      %p348 = scmp.ne.s32.totalorder %s337, %s340
      %p349 = scmp.eq.s32.totalorder %s28, 1
      %p350 = por %p348, %p349
      %p351 = scmp.ne.s32.totalorder %s340, %s341
      %p352 = scmp.eq.s32.totalorder %s28, 0
      %p353 = por %p351, %p352
      %p354 = scmp.ne.s32.totalorder %s340, %s341
      %p355 = scmp.eq.s32.totalorder %s29, 1
      %p356 = por %p354, %p355
      %p358 = scmp.ne.s32.totalorder %s341, %s357
      %p359 = scmp.eq.s32.totalorder %s29, 0
      %p360 = por %p358, %p359
      %p361 = scmp.le.s32.totalorder 1, %s23
      %p362 = scmp.lt.s32.totalorder %s23, 3
      %p363 = pnand %p361, %p362
      %p364 = pneg %p363
      // Predicated region
      $region9: #{tpu_custom_call.1} parent=5 // pred_check
        _
      $region10: #{tpu_custom_call.1} parent=5 // pred_check_branch
        %366 = sbr.rel (%p363) target = $region12
      $region11: #{tpu_custom_call.1} parent=5 // pred_region
        %s367 = ssub.s32 %s23, 1
        // Predicated region
        $region13: #{tpu_custom_call.1} parent=11 // pred_check
          %p368 = pneg %p96
        $region14: #{tpu_custom_call.1} parent=11 // pred_check_branch
          %370 = sbr.rel (%p368) target = $region16
        $region15: #{tpu_custom_call.1} parent=11 // pred_region
          _
        $region16: #{tpu_custom_call.1} parent=11 // pred_fallthru
          _
        // Predicated region
        $region17: #{tpu_custom_call.1} parent=11 // pred_check
          %p371 = pneg %p117
        $region18: #{tpu_custom_call.1} parent=11 // pred_check_branch
          %373 = sbr.rel (%p371) target = $region20
        $region19: #{tpu_custom_call.1} parent=11 // pred_region
          _
        $region20: #{tpu_custom_call.1} parent=11 // pred_fallthru
          _
        // Predicated region
        $region21: #{tpu_custom_call.1} parent=11 // pred_check
          %p374 = pneg %p138
        $region22: #{tpu_custom_call.1} parent=11 // pred_check_branch
          %376 = sbr.rel (%p374) target = $region24
        $region23: #{tpu_custom_call.1} parent=11 // pred_region
          _
        $region24: #{tpu_custom_call.1} parent=11 // pred_fallthru
          _
        // Predicated region
        $region25: #{tpu_custom_call.1} parent=11 // pred_check
          %p377 = pneg %p159
        $region26: #{tpu_custom_call.1} parent=11 // pred_check_branch
          %379 = sbr.rel (%p377) target = $region28
        $region27: #{tpu_custom_call.1} parent=11 // pred_region
          _
        $region28: #{tpu_custom_call.1} parent=11 // pred_fallthru
          _
        // Predicated region
        $region29: #{tpu_custom_call.1} parent=11 // pred_check
          %p380 = pneg %p180
        $region30: #{tpu_custom_call.1} parent=11 // pred_check_branch
          %382 = sbr.rel (%p380) target = $region32
        $region31: #{tpu_custom_call.1} parent=11 // pred_region
          _
        $region32: #{tpu_custom_call.1} parent=11 // pred_fallthru
          _
        // Predicated region
        $region33: #{tpu_custom_call.1} parent=11 // pred_check
          %p383 = pneg %p201
        $region34: #{tpu_custom_call.1} parent=11 // pred_check_branch
          %385 = sbr.rel (%p383) target = $region36
        $region35: #{tpu_custom_call.1} parent=11 // pred_region
          _
        $region36: #{tpu_custom_call.1} parent=11 // pred_fallthru
          _
        // Predicated region
        $region37: #{tpu_custom_call.1} parent=11 // pred_check
          %p386 = pneg %p222
        $region38: #{tpu_custom_call.1} parent=11 // pred_check_branch
          %388 = sbr.rel (%p386) target = $region40
        $region39: #{tpu_custom_call.1} parent=11 // pred_region
          _
        $region40: #{tpu_custom_call.1} parent=11 // pred_fallthru
          _
        // Predicated region
        $region41: #{tpu_custom_call.1} parent=11 // pred_check
          %p389 = pneg %p243
        $region42: #{tpu_custom_call.1} parent=11 // pred_check_branch
          %391 = sbr.rel (%p389) target = $region44
        $region43: #{tpu_custom_call.1} parent=11 // pred_region
          _
        $region44: #{tpu_custom_call.1} parent=11 // pred_fallthru
          _
        // Predicated region
        $region45: #{tpu_custom_call.1} parent=11 // pred_check
          %p392 = pneg %p264
        $region46: #{tpu_custom_call.1} parent=11 // pred_check_branch
          %394 = sbr.rel (%p392) target = $region48
        $region47: #{tpu_custom_call.1} parent=11 // pred_region
          _
        $region48: #{tpu_custom_call.1} parent=11 // pred_fallthru
          _
        // Predicated region
        $region49: #{tpu_custom_call.1} parent=11 // pred_check
          %p395 = pneg %p285
        $region50: #{tpu_custom_call.1} parent=11 // pred_check_branch
          %397 = sbr.rel (%p395) target = $region52
        $region51: #{tpu_custom_call.1} parent=11 // pred_region
          _
        $region52: #{tpu_custom_call.1} parent=11 // pred_fallthru
          _
        // Predicated region
        $region53: #{tpu_custom_call.1} parent=11 // pred_check
          %p398 = pneg %p306
        $region54: #{tpu_custom_call.1} parent=11 // pred_check_branch
          %400 = sbr.rel (%p398) target = $region56
        $region55: #{tpu_custom_call.1} parent=11 // pred_region
          _
        $region56: #{tpu_custom_call.1} parent=11 // pred_fallthru
          _
        // Predicated region
        $region57: #{tpu_custom_call.1} parent=11 // pred_check
          %p401 = pneg %p327
        $region58: #{tpu_custom_call.1} parent=11 // pred_check_branch
          %403 = sbr.rel (%p401) target = $region60
        $region59: #{tpu_custom_call.1} parent=11 // pred_region
          _
        $region60: #{tpu_custom_call.1} parent=11 // pred_fallthru
          _
      $region12: #{tpu_custom_call.1} parent=5 // pred_fallthru
        _
      %p404 = scmp.lt.s32.totalorder %s23, 2
      // Predicated region
      $region61: #{tpu_custom_call.1} parent=5 // pred_check
        %p405 = pneg %p404
      $region62: #{tpu_custom_call.1} parent=5 // pred_check_branch
        %407 = sbr.rel (%p405) target = $region64
      $region63: #{tpu_custom_call.1} parent=5 // pred_region
        // Predicated region
        $region65: #{tpu_custom_call.1} parent=63 // pred_check
          %p408 = pneg %p43
        $region66: #{tpu_custom_call.1} parent=63 // pred_check_branch
          %410 = sbr.rel (%p408) target = $region68
        $region67: #{tpu_custom_call.1} parent=63 // pred_region
          %p411 = scmp.lt.s32.totalorder %s23, 1
          %s412 = scalar_select %p411, %s23, 1
          %s413 = smul.addr %s412, 8
          %s414 = scalar_lea.vmem %s0, %s413
        $region68: #{tpu_custom_call.1} parent=63 // pred_fallthru
          _
        // Predicated region
        $region69: #{tpu_custom_call.1} parent=63 // pred_check
          %p415 = pneg %p69
        $region70: #{tpu_custom_call.1} parent=63 // pred_check_branch
          %417 = sbr.rel (%p415) target = $region72
        $region71: #{tpu_custom_call.1} parent=63 // pred_region
          %p418 = scmp.lt.s32.totalorder %s23, 1
          %s419 = scalar_select %p418, %s23, 1
          %s420 = scalar_lea.vmem %s1, %s419
        $region72: #{tpu_custom_call.1} parent=63 // pred_fallthru
          _
      $region64: #{tpu_custom_call.1} parent=5 // pred_fallthru
        _
      %p421 = scmp.le.s32.totalorder 1, %s23
      %p422 = scmp.lt.s32.totalorder %s23, 3
      %p423 = pnand %p421, %p422
      %p424 = pneg %p423
      // Predicated region
      $region73: #{tpu_custom_call.1} parent=5 // pred_check
        _
      $region74: #{tpu_custom_call.1} parent=5 // pred_check_branch
        %426 = sbr.rel (%p423) target = $region76
      $region75: #{tpu_custom_call.1} parent=5 // pred_region
        %s427 = ssub.s32 %s23, 1
        %p428 = scmp.lt.s32.totalorder %s28, 1
        %s429 = scalar_select %p428, %s28, 1
        %s430 = smul.addr %s429, 8
        %s431 = scalar_lea.vmem %s0, %s430
        %p432 = pneg %p49
        %p433 = pneg %p46
        %p434 = scmp.lt.s32.totalorder %s28, 1
        %s435 = scalar_select %p434, %s28, 1
        %s436 = scalar_lea.vmem %s1, %s435
        %p437 = pneg %p75
        %p438 = pneg %p72
        %p439 = pneg %p96
        %p440 = pneg %p93
        %p441 = pneg %p117
        %p442 = pneg %p114
        %p443 = pneg %p138
        %p444 = pneg %p135
        %p445 = pneg %p159
        %p446 = pneg %p156
        %p447 = pneg %p180
        %p448 = pneg %p177
        %p449 = pneg %p201
        %p450 = pneg %p198
        %p451 = pneg %p222
        %p452 = pneg %p219
        %p453 = pneg %p243
        %p454 = pneg %p240
        %p455 = pneg %p264
        %p456 = pneg %p261
        %p457 = pneg %p285
        %p458 = pneg %p282
        %p459 = pneg %p306
        %p460 = pneg %p303
        %p461 = pneg %p327
        %p462 = pneg %p324
        %p463 = pneg %p353
        %p464 = pneg %p350
        %s465 = sand.u32 %s340, 1
        %s466 = scalar_lea.sflag [#allocation3], %s465
        %s467 = sand.u32 %s340, 1
        %s468 = smul.addr %s467, 8
        %s469 = scalar_lea.vmem [#allocation2], %s468
        %p470 = scmp.lt.s32.totalorder %s28, 1
        %s471 = scalar_select %p470, %s28, 1
        %s472 = smul.addr %s471, 8
        %s473 = scalar_lea.vmem %s0, %s472
        %p474 = scmp.lt.s32.totalorder %s28, 1
        %s475 = scalar_select %p474, %s28, 1
        %s476 = scalar_lea.vmem %s1, %s475
        %v478 = vld [vmem:[%s473] sm:$0xff]
        %v479 = vpack.c.bf16 %v478, %v478
        %v480 = vld [vmem:[%s3] sm:$0xf]
        %v481 = vld [vmem:[%s3 + $0x4] sm:$0xf]
        %v482 = vld [vmem:[%s3 + $0x8] sm:$0xf]
        %v483 = vld [vmem:[%s3 + $0xc] sm:$0xf]
        %v488 = vunpack.c.l.b16 %v480
        %v489 = vunpack.c.l.b16 %v481
        %v490 = vunpack.c.l.b16 %v482
        %v491 = vunpack.c.l.b16 %v483
        %v492 = vpack.c.b16 %v489, %v488
        %v493 = vpack.c.b16 %v491, %v490
        %vm496 = vcmask 261120
        %v498 = vsel %vm496, %v479, 0
        %500 = vmatprep.subr.bf16.mxu0 0
        %501 = vmatpush1.bf16.msra.mxu0 %v492
        %502 = vmatprep.subr.bf16.mxu0 0
        %503 = vmatpush1.bf16.msra.mxu0 %v493
        %504 = vmatprep.subr.bf16.mxu0 0
        %505 = vmatpush1.bf16.msra.mxu0 0
        %506 = vmatprep.subr.bf16.mxu0 0
        %507 = vmatpush1.bf16.msra.mxu0 0
        %508 = vmatprep.subr.bf16.mxu0 0
        %509 = vmatpush1.bf16.msra.mxu0 0
        %510 = vmatprep.subr.bf16.mxu0 0
        %511 = vmatpush1.bf16.msra.mxu0 0
        %512 = vmatprep.subr.bf16.mxu0 0
        %513 = vmatpush1.bf16.msra.mxu0 0
        %514 = vmatprep.subr.bf16.mxu0 0
        %515 = vmatpush1.bf16.msra.mxu0 0
        %516 = vmatprep.subr.bf16.mxu0 0
        %517 = vmatpush1.bf16.msra.mxu0 0
        %518 = vmatprep.subr.bf16.mxu0 0
        %519 = vmatpush1.bf16.msra.mxu0 0
        %520 = vmatprep.subr.bf16.mxu0 0
        %521 = vmatpush1.bf16.msra.mxu0 0
        %522 = vmatprep.subr.bf16.mxu0 0
        %523 = vmatpush1.bf16.msra.mxu0 0
        %524 = vmatprep.subr.bf16.mxu0 0
        %525 = vmatpush1.bf16.msra.mxu0 0
        %526 = vmatprep.subr.bf16.mxu0 0
        %527 = vmatpush1.bf16.msra.mxu0 0
        %528 = vmatprep.subr.bf16.mxu0 0
        %529 = vmatpush1.bf16.msra.mxu0 0
        %530 = vmatprep.subr.bf16.mxu0 0
        %531 = vmatpush1.bf16.msra.mxu0 0
        %532 = vmatprep.mubr.bf16.mxu0 0
        %533 = vmatmul.mubr.bf16.gmra.mrb[0].mxu0 %v498
        %v534 = vpop.f32.mrb[0].mxu0
        %v535 = vadd.f32 0.0, %v534
        %v536 = vpop.f32.mrb[0].mxu0
        %v537 = vpop.f32.mrb[0].mxu0
        %v538 = vpop.f32.mrb[0].mxu0
        %539 = vdwg.mxu0
        %v540 = vld [vmem:[%s476] sm:$0x1]
        %v541 = vld [vmem:[%s4] sm:$0x1]
        %v543 = vlaneseq
        %v544 = vshrl.u32 %v543, 7
        %v545 = vsub.s32 0, %v544
        %v546 = vrot.slane %v541, %v545
        %v548 = vadd.f32 %v535, %v546
        %v549 = vmul.f32 %v548, 0.35355338
        %551 = vrot.lane.b32.xlu0 %v549, 120
        %v552 = vpop.permute.xlu0 %551
        %554 = vrot.lane.b32.xlu0 %v549, 112
        %v555 = vpop.permute.xlu0 %554
        %557 = vrot.lane.b32.xlu0 %v549, 104
        %v558 = vpop.permute.xlu0 %557
        %v560 = vpack.c.bf16 %v549, %v549
        %v561 = vpack.c.bf16 %v552, %v552
        %v562 = vpack.c.bf16 %v555, %v555
        %v563 = vpack.c.bf16 %v558, %v558
        %v564 = vld [vmem:[%s5] sm:$0x1]
        %v565 = vld [vmem:[%s2] sm:$0xf]
        %v566 = vld [vmem:[%s2 + $0x4] sm:$0xf]
        %v568 = vlaneseq
        %v569 = vshrl.u32 %v568, 7
        %v570 = vsub.s32 0, %v569
        %v571 = vrot.slane %v564, %v570
        %v573 = vadd.f32 %v535, %v571
        %v574 = vmul.f32 %v573, 0.35355338
        %576 = vrot.lane.b32.xlu0 %v574, 120
        %v577 = vpop.permute.xlu0 %576
        %579 = vrot.lane.b32.xlu0 %v574, 112
        %v580 = vpop.permute.xlu0 %579
        %582 = vrot.lane.b32.xlu0 %v574, 104
        %v583 = vpop.permute.xlu0 %582
        %v585 = vpack.c.bf16 %v577, %v574
        %v586 = vpack.c.bf16 %v583, %v580
        %v589 = vunpack.c.l.b16 %v565
        %v590 = vunpack.c.l.b16 %v566
        %v591 = vpack.c.b16 %v590, %v589
        %vm592 = vcmask 64512
        %v594 = vsel %vm592, %v585, 0
        %v597 = vsel %vm592, %v586, 0
        %v600 = vsel %vm592, %v591, 0
        %602 = vmatprep.subr.bf16.mxu0 0
        %603 = vmatpush1.bf16.xpose.msra.mxu0 %v600
        %604 = vmatprep.subr.bf16.mxu0 0
        %605 = vmatpush1.bf16.xpose.msra.mxu0 0
        %606 = vmatprep.subr.bf16.mxu0 0
        %607 = vmatpush1.bf16.xpose.msra.mxu0 0
        %608 = vmatprep.subr.bf16.mxu0 0
        %609 = vmatpush1.bf16.xpose.msra.mxu0 0
        %610 = vmatprep.subr.bf16.mxu0 0
        %611 = vmatpush1.bf16.xpose.msra.mxu0 0
        %612 = vmatprep.subr.bf16.mxu0 0
        %613 = vmatpush1.bf16.xpose.msra.mxu0 0
        %614 = vmatprep.subr.bf16.mxu0 0
        %615 = vmatpush1.bf16.xpose.msra.mxu0 0
        %616 = vmatprep.subr.bf16.mxu0 0
        %617 = vmatpush1.bf16.xpose.msra.mxu0 0
        %618 = vmatprep.subr.bf16.mxu0 0
        %619 = vmatpush1.bf16.xpose.msra.mxu0 0
        %620 = vmatprep.subr.bf16.mxu0 0
        %621 = vmatpush1.bf16.xpose.msra.mxu0 0
        %622 = vmatprep.subr.bf16.mxu0 0
        %623 = vmatpush1.bf16.xpose.msra.mxu0 0
        %624 = vmatprep.subr.bf16.mxu0 0
        %625 = vmatpush1.bf16.xpose.msra.mxu0 0
        %626 = vmatprep.subr.bf16.mxu0 0
        %627 = vmatpush1.bf16.xpose.msra.mxu0 0
        %628 = vmatprep.subr.bf16.mxu0 0
        %629 = vmatpush1.bf16.xpose.msra.mxu0 0
        %630 = vmatprep.subr.bf16.mxu0 0
        %631 = vmatpush1.bf16.xpose.msra.mxu0 0
        %632 = vmatprep.subr.bf16.mxu0 0
        %633 = vmatpush1.bf16.xpose.msra.mxu0 0
        %634 = vmatprep.mubr.bf16.mxu0 0
        %635 = vmatmul.mubr.bf16.gmra.mrb[0].mxu0 %v594
        %v636 = vpop.f32.mrb[0].mxu0
        %v637 = vadd.f32 0.0, %v636
        %v638 = vpop.f32.mrb[0].mxu0
        %v639 = vpop.f32.mrb[0].mxu0
        %v640 = vadd.f32 0.0, %v639
        %v641 = vpop.f32.mrb[0].mxu0
        %642 = vmatprep.mubr.bf16.mxu0 0
        %643 = vmatmul.mubr.bf16.gmra.mrb[0].mxu0 %v597
        %v644 = vpop.f32.mrb[0].mxu0
        %v645 = vadd.f32 0.0, %v644
        %v646 = vpop.f32.mrb[0].mxu0
        %v647 = vpop.f32.mrb[0].mxu0
        %v648 = vadd.f32 0.0, %v647
        %v649 = vpop.f32.mrb[0].mxu0
        %650 = vdwg.mxu0
        %655 = vrot.lane.b32.xlu0 %v637, 1
        %v656 = vpop.permute.xlu0 %655
        %657 = vrot.lane.b32.xlu0 %v640, 1
        %v658 = vpop.permute.xlu0 %657
        %659 = vrot.lane.b32.xlu0 %v645, 1
        %v660 = vpop.permute.xlu0 %659
        %661 = vrot.lane.b32.xlu0 %v648, 1
        %v662 = vpop.permute.xlu0 %661
        %667 = vrot.lane.b32.xlu0 %v637, 2
        %v668 = vpop.permute.xlu0 %667
        %669 = vrot.lane.b32.xlu0 %v640, 2
        %v670 = vpop.permute.xlu0 %669
        %671 = vrot.lane.b32.xlu0 %v645, 2
        %v672 = vpop.permute.xlu0 %671
        %673 = vrot.lane.b32.xlu0 %v648, 2
        %v674 = vpop.permute.xlu0 %673
        %679 = vrot.lane.b32.xlu0 %v637, 3
        %v680 = vpop.permute.xlu0 %679
        %681 = vrot.lane.b32.xlu0 %v640, 3
        %v682 = vpop.permute.xlu0 %681
        %683 = vrot.lane.b32.xlu0 %v645, 3
        %v684 = vpop.permute.xlu0 %683
        %685 = vrot.lane.b32.xlu0 %v648, 3
        %v686 = vpop.permute.xlu0 %685
        %691 = vrot.lane.b32.xlu0 %v637, 4
        %v692 = vpop.permute.xlu0 %691
        %693 = vrot.lane.b32.xlu0 %v640, 4
        %v694 = vpop.permute.xlu0 %693
        %695 = vrot.lane.b32.xlu0 %v645, 4
        %v696 = vpop.permute.xlu0 %695
        %697 = vrot.lane.b32.xlu0 %v648, 4
        %v698 = vpop.permute.xlu0 %697
        %703 = vrot.lane.b32.xlu0 %v637, 5
        %v704 = vpop.permute.xlu0 %703
        %705 = vrot.lane.b32.xlu0 %v640, 5
        %v706 = vpop.permute.xlu0 %705
        %707 = vrot.lane.b32.xlu0 %v645, 5
        %v708 = vpop.permute.xlu0 %707
        %709 = vrot.lane.b32.xlu0 %v648, 5
        %v710 = vpop.permute.xlu0 %709
        %715 = vrot.lane.b32.xlu0 %v637, 6
        %v716 = vpop.permute.xlu0 %715
        %717 = vrot.lane.b32.xlu0 %v640, 6
        %v718 = vpop.permute.xlu0 %717
        %719 = vrot.lane.b32.xlu0 %v645, 6
        %v720 = vpop.permute.xlu0 %719
        %721 = vrot.lane.b32.xlu0 %v648, 6
        %v722 = vpop.permute.xlu0 %721
        %727 = vrot.lane.b32.xlu0 %v637, 7
        %v728 = vpop.permute.xlu0 %727
        %729 = vrot.lane.b32.xlu0 %v640, 7
        %v730 = vpop.permute.xlu0 %729
        %731 = vrot.lane.b32.xlu0 %v645, 7
        %v732 = vpop.permute.xlu0 %731
        %733 = vrot.lane.b32.xlu0 %v648, 7
        %v734 = vpop.permute.xlu0 %733
        %vm739 = vcmask 1040384
        %v740 = vsel %vm739, %v637, %v656
        %v741 = vsel %vm739, %v640, %v658
        %v742 = vsel %vm739, %v645, %v660
        %v743 = vsel %vm739, %v648, %v662
        %vm744 = vcmask 1041408
        %v745 = vsel %vm744, %v740, %v668
        %v746 = vsel %vm744, %v741, %v670
        %v747 = vsel %vm744, %v742, %v672
        %v748 = vsel %vm744, %v743, %v674
        %vm749 = vcmask 1042432
        %v750 = vsel %vm749, %v745, %v680
        %v751 = vsel %vm749, %v746, %v682
        %v752 = vsel %vm749, %v747, %v684
        %v753 = vsel %vm749, %v748, %v686
        %vm754 = vcmask 1043456
        %v755 = vsel %vm754, %v750, %v692
        %v756 = vsel %vm754, %v751, %v694
        %v757 = vsel %vm754, %v752, %v696
        %v758 = vsel %vm754, %v753, %v698
        %vm759 = vcmask 1044480
        %v760 = vsel %vm759, %v755, %v704
        %v761 = vsel %vm759, %v756, %v706
        %v762 = vsel %vm759, %v757, %v708
        %v763 = vsel %vm759, %v758, %v710
        %vm764 = vcmask 1045504
        %v765 = vsel %vm764, %v760, %v716
        %v766 = vsel %vm764, %v761, %v718
        %v767 = vsel %vm764, %v762, %v720
        %v768 = vsel %vm764, %v763, %v722
        %vm769 = vcmask 1046528
        %v770 = vsel %vm769, %v765, %v728
        %v771 = vsel %vm769, %v766, %v730
        %v772 = vsel %vm769, %v767, %v732
        %v773 = vsel %vm769, %v768, %v734
        %775 = vrot.lane.b32.xlu0 %v535, 120
        %v776 = vpop.permute.xlu0 %775
        %778 = vrot.lane.b32.xlu0 %v535, 112
        %v779 = vpop.permute.xlu0 %778
        %781 = vrot.lane.b32.xlu0 %v535, 104
        %v782 = vpop.permute.xlu0 %781
        %v784 = vpack.c.bf16 %v535, %v535
        %v785 = vpack.c.bf16 %v776, %v776
        %v786 = vpack.c.bf16 %v779, %v779
        %v787 = vpack.c.bf16 %v782, %v782
        %789 = vrot.lane.b32.xlu0 %v784, 96
        %v790 = vpop.permute.xlu0 %789
        %792 = vrot.lane.b32.xlu0 %v770, 120
        %v793 = vpop.permute.xlu0 %792
        %v796 = vsel %vm592, %v560, 0
        %v799 = vsel %vm592, %v790, 0
        %801 = vmatprep.subr.bf16.mxu0 0
        %802 = vmatpush1.bf16.xpose.msra.mxu0 %v799
        %803 = vmatprep.subr.bf16.mxu0 0
        %804 = vmatpush1.bf16.xpose.msra.mxu0 0
        %805 = vmatprep.subr.bf16.mxu0 0
        %806 = vmatpush1.bf16.xpose.msra.mxu0 0
        %807 = vmatprep.subr.bf16.mxu0 0
        %808 = vmatpush1.bf16.xpose.msra.mxu0 0
        %809 = vmatprep.subr.bf16.mxu0 0
        %810 = vmatpush1.bf16.xpose.msra.mxu0 0
        %811 = vmatprep.subr.bf16.mxu0 0
        %812 = vmatpush1.bf16.xpose.msra.mxu0 0
        %813 = vmatprep.subr.bf16.mxu0 0
        %814 = vmatpush1.bf16.xpose.msra.mxu0 0
        %815 = vmatprep.subr.bf16.mxu0 0
        %816 = vmatpush1.bf16.xpose.msra.mxu0 0
        %817 = vmatprep.subr.bf16.mxu0 0
        %818 = vmatpush1.bf16.xpose.msra.mxu0 0
        %819 = vmatprep.subr.bf16.mxu0 0
        %820 = vmatpush1.bf16.xpose.msra.mxu0 0
        %821 = vmatprep.subr.bf16.mxu0 0
        %822 = vmatpush1.bf16.xpose.msra.mxu0 0
        %823 = vmatprep.subr.bf16.mxu0 0
        %824 = vmatpush1.bf16.xpose.msra.mxu0 0
        %825 = vmatprep.subr.bf16.mxu0 0
        %826 = vmatpush1.bf16.xpose.msra.mxu0 0
        %827 = vmatprep.subr.bf16.mxu0 0
        %828 = vmatpush1.bf16.xpose.msra.mxu0 0
        %829 = vmatprep.subr.bf16.mxu0 0
        %830 = vmatpush1.bf16.xpose.msra.mxu0 0
        %831 = vmatprep.subr.bf16.mxu0 0
        %832 = vmatpush1.bf16.xpose.msra.mxu0 0
        %833 = vmatprep.mubr.bf16.mxu0 0
        %834 = vmatmul.mubr.bf16.gmra.mrb[0].mxu0 %v796
        %v835 = vpop.f32.mrb[0].mxu0
        %v836 = vadd.f32 %v793, %v835
        %v837 = vpop.f32.mrb[0].mxu0
        %v838 = vpop.f32.mrb[0].mxu0
        %v839 = vpop.f32.mrb[0].mxu0
        %840 = vdwg.mxu0
        %842 = vrot.lane.b32.xlu0 %v785, 96
        %v843 = vpop.permute.xlu0 %842
        %845 = vrot.lane.b32.xlu0 %v771, 120
        %v846 = vpop.permute.xlu0 %845
        %v849 = vsel %vm592, %v561, 0
        %v852 = vsel %vm592, %v843, 0
        %854 = vmatprep.subr.bf16.mxu0 0
        %855 = vmatpush1.bf16.xpose.msra.mxu0 %v852
        %856 = vmatprep.subr.bf16.mxu0 0
        %857 = vmatpush1.bf16.xpose.msra.mxu0 0
        %858 = vmatprep.subr.bf16.mxu0 0
        %859 = vmatpush1.bf16.xpose.msra.mxu0 0
        %860 = vmatprep.subr.bf16.mxu0 0
        %861 = vmatpush1.bf16.xpose.msra.mxu0 0
        %862 = vmatprep.subr.bf16.mxu0 0
        %863 = vmatpush1.bf16.xpose.msra.mxu0 0
        %864 = vmatprep.subr.bf16.mxu0 0
        %865 = vmatpush1.bf16.xpose.msra.mxu0 0
        %866 = vmatprep.subr.bf16.mxu0 0
        %867 = vmatpush1.bf16.xpose.msra.mxu0 0
        %868 = vmatprep.subr.bf16.mxu0 0
        %869 = vmatpush1.bf16.xpose.msra.mxu0 0
        %870 = vmatprep.subr.bf16.mxu0 0
        %871 = vmatpush1.bf16.xpose.msra.mxu0 0
        %872 = vmatprep.subr.bf16.mxu0 0
        %873 = vmatpush1.bf16.xpose.msra.mxu0 0
        %874 = vmatprep.subr.bf16.mxu0 0
        %875 = vmatpush1.bf16.xpose.msra.mxu0 0
        %876 = vmatprep.subr.bf16.mxu0 0
        %877 = vmatpush1.bf16.xpose.msra.mxu0 0
        %878 = vmatprep.subr.bf16.mxu0 0
        %879 = vmatpush1.bf16.xpose.msra.mxu0 0
        %880 = vmatprep.subr.bf16.mxu0 0
        %881 = vmatpush1.bf16.xpose.msra.mxu0 0
        %882 = vmatprep.subr.bf16.mxu0 0
        %883 = vmatpush1.bf16.xpose.msra.mxu0 0
        %884 = vmatprep.subr.bf16.mxu0 0
        %885 = vmatpush1.bf16.xpose.msra.mxu0 0
        %886 = vmatprep.mubr.bf16.mxu0 0
        %887 = vmatmul.mubr.bf16.gmra.mrb[0].mxu0 %v849
        %v888 = vpop.f32.mrb[0].mxu0
        %v889 = vadd.f32 %v846, %v888
        %v890 = vpop.f32.mrb[0].mxu0
        %v891 = vpop.f32.mrb[0].mxu0
        %v892 = vpop.f32.mrb[0].mxu0
        %893 = vdwg.mxu0
        %895 = vrot.lane.b32.xlu0 %v786, 96
        %v896 = vpop.permute.xlu0 %895
        %898 = vrot.lane.b32.xlu0 %v772, 120
        %v899 = vpop.permute.xlu0 %898
        %v902 = vsel %vm592, %v562, 0
        %v905 = vsel %vm592, %v896, 0
        %907 = vmatprep.subr.bf16.mxu0 0
        %908 = vmatpush1.bf16.xpose.msra.mxu0 %v905
        %909 = vmatprep.subr.bf16.mxu0 0
        %910 = vmatpush1.bf16.xpose.msra.mxu0 0
        %911 = vmatprep.subr.bf16.mxu0 0
        %912 = vmatpush1.bf16.xpose.msra.mxu0 0
        %913 = vmatprep.subr.bf16.mxu0 0
        %914 = vmatpush1.bf16.xpose.msra.mxu0 0
        %915 = vmatprep.subr.bf16.mxu0 0
        %916 = vmatpush1.bf16.xpose.msra.mxu0 0
        %917 = vmatprep.subr.bf16.mxu0 0
        %918 = vmatpush1.bf16.xpose.msra.mxu0 0
        %919 = vmatprep.subr.bf16.mxu0 0
        %920 = vmatpush1.bf16.xpose.msra.mxu0 0
        %921 = vmatprep.subr.bf16.mxu0 0
        %922 = vmatpush1.bf16.xpose.msra.mxu0 0
        %923 = vmatprep.subr.bf16.mxu0 0
        %924 = vmatpush1.bf16.xpose.msra.mxu0 0
        %925 = vmatprep.subr.bf16.mxu0 0
        %926 = vmatpush1.bf16.xpose.msra.mxu0 0
        %927 = vmatprep.subr.bf16.mxu0 0
        %928 = vmatpush1.bf16.xpose.msra.mxu0 0
        %929 = vmatprep.subr.bf16.mxu0 0
        %930 = vmatpush1.bf16.xpose.msra.mxu0 0
        %931 = vmatprep.subr.bf16.mxu0 0
        %932 = vmatpush1.bf16.xpose.msra.mxu0 0
        %933 = vmatprep.subr.bf16.mxu0 0
        %934 = vmatpush1.bf16.xpose.msra.mxu0 0
        %935 = vmatprep.subr.bf16.mxu0 0
        %936 = vmatpush1.bf16.xpose.msra.mxu0 0
        %937 = vmatprep.subr.bf16.mxu0 0
        %938 = vmatpush1.bf16.xpose.msra.mxu0 0
        %939 = vmatprep.mubr.bf16.mxu0 0
        %940 = vmatmul.mubr.bf16.gmra.mrb[0].mxu0 %v902
        %v941 = vpop.f32.mrb[0].mxu0
        %v942 = vadd.f32 %v899, %v941
        %v943 = vpop.f32.mrb[0].mxu0
        %v944 = vpop.f32.mrb[0].mxu0
        %v945 = vpop.f32.mrb[0].mxu0
        %946 = vdwg.mxu0
        %948 = vrot.lane.b32.xlu0 %v787, 96
        %v949 = vpop.permute.xlu0 %948
        %951 = vrot.lane.b32.xlu0 %v773, 120
        %v952 = vpop.permute.xlu0 %951
        %v955 = vsel %vm592, %v563, 0
        %v958 = vsel %vm592, %v949, 0
        %960 = vmatprep.subr.bf16.mxu0 0
        %961 = vmatpush1.bf16.xpose.msra.mxu0 %v958
        %962 = vmatprep.subr.bf16.mxu0 0
        %963 = vmatpush1.bf16.xpose.msra.mxu0 0
        %964 = vmatprep.subr.bf16.mxu0 0
        %965 = vmatpush1.bf16.xpose.msra.mxu0 0
        %966 = vmatprep.subr.bf16.mxu0 0
        %967 = vmatpush1.bf16.xpose.msra.mxu0 0
        %968 = vmatprep.subr.bf16.mxu0 0
        %969 = vmatpush1.bf16.xpose.msra.mxu0 0
        %970 = vmatprep.subr.bf16.mxu0 0
        %971 = vmatpush1.bf16.xpose.msra.mxu0 0
        %972 = vmatprep.subr.bf16.mxu0 0
        %973 = vmatpush1.bf16.xpose.msra.mxu0 0
        %974 = vmatprep.subr.bf16.mxu0 0
        %975 = vmatpush1.bf16.xpose.msra.mxu0 0
        %976 = vmatprep.subr.bf16.mxu0 0
        %977 = vmatpush1.bf16.xpose.msra.mxu0 0
        %978 = vmatprep.subr.bf16.mxu0 0
        %979 = vmatpush1.bf16.xpose.msra.mxu0 0
        %980 = vmatprep.subr.bf16.mxu0 0
        %981 = vmatpush1.bf16.xpose.msra.mxu0 0
        %982 = vmatprep.subr.bf16.mxu0 0
        %983 = vmatpush1.bf16.xpose.msra.mxu0 0
        %984 = vmatprep.subr.bf16.mxu0 0
        %985 = vmatpush1.bf16.xpose.msra.mxu0 0
        %986 = vmatprep.subr.bf16.mxu0 0
        %987 = vmatpush1.bf16.xpose.msra.mxu0 0
        %988 = vmatprep.subr.bf16.mxu0 0
        %989 = vmatpush1.bf16.xpose.msra.mxu0 0
        %990 = vmatprep.subr.bf16.mxu0 0
        %991 = vmatpush1.bf16.xpose.msra.mxu0 0
        %992 = vmatprep.mubr.bf16.mxu0 0
        %993 = vmatmul.mubr.bf16.gmra.mrb[0].mxu0 %v955
        %v994 = vpop.f32.mrb[0].mxu0
        %v995 = vadd.f32 %v952, %v994
        %v996 = vpop.f32.mrb[0].mxu0
        %v997 = vpop.f32.mrb[0].mxu0
        %v998 = vpop.f32.mrb[0].mxu0
        %999 = vdwg.mxu0
        %v1001 = vlaneseq
        %v1002 = vshrl.u32 %v1001, 7
        %v1003 = vsub.s32 0, %v1002
        %v1004 = vrot.slane %v540, %v1003
        %v1006 = vadd.f32 %v836, %v1004
        %v1007 = vadd.f32 %v889, %v1004
        %v1008 = vadd.f32 %v942, %v1004
        %v1009 = vadd.f32 %v995, %v1004
        %v1010 = vsel %vm592, %v1006, -inf
        %1011 = vmax.xlane.f32.xlu0 %v1010
        %v1012 = vpop.xlane.xlu0 %1011
        %v1013 = vsel %vm592, %v1007, -inf
        %1014 = vmax.xlane.f32.xlu0 %v1013
        %v1015 = vpop.xlane.xlu0 %1014
        %v1016 = vsel %vm592, %v1008, -inf
        %1017 = vmax.xlane.f32.xlu0 %v1016
        %v1018 = vpop.xlane.xlu0 %1017
        %v1019 = vsel %vm592, %v1009, -inf
        %1020 = vmax.xlane.f32.xlu0 %v1019
        %v1021 = vpop.xlane.xlu0 %1020
        %v1022 = vsub.f32 %v1006, %v1012
        %v1023 = vsub.f32 %v1007, %v1015
        %v1024 = vsub.f32 %v1008, %v1018
        %v1025 = vsub.f32 %v1009, %v1021
        %v1026 = vmul.f32 %v1022, 1.442695
        %v1027 = vpow.pop %v1026
        %v1028 = vmul.f32 %v1023, 1.442695
        %v1029 = vpow.pop %v1028
        %v1030 = vmul.f32 %v1024, 1.442695
        %v1031 = vpow.pop %v1030
        %v1032 = vmul.f32 %v1025, 1.442695
        %v1033 = vpow.pop %v1032
        %v1034 = vsel %vm592, %v1027, 0.0
        %1035 = vadd.xlane.f32.xlu0 %v1034
        %v1036 = vpop.xlane.xlu0 %1035
        %v1037 = vsel %vm592, %v1029, 0.0
        %1038 = vadd.xlane.f32.xlu0 %v1037
        %v1039 = vpop.xlane.xlu0 %1038
        %v1040 = vsel %vm592, %v1031, 0.0
        %1041 = vadd.xlane.f32.xlu0 %v1040
        %v1042 = vpop.xlane.xlu0 %1041
        %v1043 = vsel %vm592, %v1033, 0.0
        %1044 = vadd.xlane.f32.xlu0 %v1043
        %v1045 = vpop.xlane.xlu0 %1044
        %v1046 = vpack.c.bf16 %v1027, %v1027
        %v1047 = vpack.c.bf16 %v1029, %v1029
        %v1048 = vpack.c.bf16 %v1031, %v1031
        %v1049 = vpack.c.bf16 %v1033, %v1033
        %1050 = vrot.lane.b32.xlu0 %v784, 64
        %v1051 = vpop.permute.xlu0 %1050
        %v1053 = vsel %vm592, %v1046, 0
        %v1056 = vsel %vm754, %v1051, 0
        %1058 = vmatprep.subr.bf16.mxu0 0
        %1059 = vmatpush1.bf16.msra.mxu0 %v1056
        %1060 = vmatprep.subr.bf16.mxu0 0
        %1061 = vmatpush1.bf16.msra.mxu0 0
        %1062 = vmatprep.subr.bf16.mxu0 0
        %1063 = vmatpush1.bf16.msra.mxu0 0
        %1064 = vmatprep.subr.bf16.mxu0 0
        %1065 = vmatpush1.bf16.msra.mxu0 0
        %1066 = vmatprep.subr.bf16.mxu0 0
        %1067 = vmatpush1.bf16.msra.mxu0 0
        %1068 = vmatprep.subr.bf16.mxu0 0
        %1069 = vmatpush1.bf16.msra.mxu0 0
        %1070 = vmatprep.subr.bf16.mxu0 0
        %1071 = vmatpush1.bf16.msra.mxu0 0
        %1072 = vmatprep.subr.bf16.mxu0 0
        %1073 = vmatpush1.bf16.msra.mxu0 0
        %1074 = vmatprep.subr.bf16.mxu0 0
        %1075 = vmatpush1.bf16.msra.mxu0 0
        %1076 = vmatprep.subr.bf16.mxu0 0
        %1077 = vmatpush1.bf16.msra.mxu0 0
        %1078 = vmatprep.subr.bf16.mxu0 0
        %1079 = vmatpush1.bf16.msra.mxu0 0
        %1080 = vmatprep.subr.bf16.mxu0 0
        %1081 = vmatpush1.bf16.msra.mxu0 0
        %1082 = vmatprep.subr.bf16.mxu0 0
        %1083 = vmatpush1.bf16.msra.mxu0 0
        %1084 = vmatprep.subr.bf16.mxu0 0
        %1085 = vmatpush1.bf16.msra.mxu0 0
        %1086 = vmatprep.subr.bf16.mxu0 0
        %1087 = vmatpush1.bf16.msra.mxu0 0
        %1088 = vmatprep.subr.bf16.mxu0 0
        %1089 = vmatpush1.bf16.msra.mxu0 0
        %1090 = vmatprep.mubr.bf16.mxu0 0
        %1091 = vmatmul.mubr.bf16.gmra.mrb[0].mxu0 %v1053
        %v1092 = vpop.f32.mrb[0].mxu0
        %v1093 = vadd.f32 0.0, %v1092
        %v1094 = vpop.f32.mrb[0].mxu0
        %v1095 = vpop.f32.mrb[0].mxu0
        %v1096 = vpop.f32.mrb[0].mxu0
        %1097 = vdwg.mxu0
        %1098 = vrot.lane.b32.xlu0 %v785, 64
        %v1099 = vpop.permute.xlu0 %1098
        %v1101 = vsel %vm592, %v1047, 0
        %v1104 = vsel %vm754, %v1099, 0
        %1106 = vmatprep.subr.bf16.mxu0 0
        %1107 = vmatpush1.bf16.msra.mxu0 %v1104
        %1108 = vmatprep.subr.bf16.mxu0 0
        %1109 = vmatpush1.bf16.msra.mxu0 0
        %1110 = vmatprep.subr.bf16.mxu0 0
        %1111 = vmatpush1.bf16.msra.mxu0 0
        %1112 = vmatprep.subr.bf16.mxu0 0
        %1113 = vmatpush1.bf16.msra.mxu0 0
        %1114 = vmatprep.subr.bf16.mxu0 0
        %1115 = vmatpush1.bf16.msra.mxu0 0
        %1116 = vmatprep.subr.bf16.mxu0 0
        %1117 = vmatpush1.bf16.msra.mxu0 0
        %1118 = vmatprep.subr.bf16.mxu0 0
        %1119 = vmatpush1.bf16.msra.mxu0 0
        %1120 = vmatprep.subr.bf16.mxu0 0
        %1121 = vmatpush1.bf16.msra.mxu0 0
        %1122 = vmatprep.subr.bf16.mxu0 0
        %1123 = vmatpush1.bf16.msra.mxu0 0
        %1124 = vmatprep.subr.bf16.mxu0 0
        %1125 = vmatpush1.bf16.msra.mxu0 0
        %1126 = vmatprep.subr.bf16.mxu0 0
        %1127 = vmatpush1.bf16.msra.mxu0 0
        %1128 = vmatprep.subr.bf16.mxu0 0
        %1129 = vmatpush1.bf16.msra.mxu0 0
        %1130 = vmatprep.subr.bf16.mxu0 0
        %1131 = vmatpush1.bf16.msra.mxu0 0
        %1132 = vmatprep.subr.bf16.mxu0 0
        %1133 = vmatpush1.bf16.msra.mxu0 0
        %1134 = vmatprep.subr.bf16.mxu0 0
        %1135 = vmatpush1.bf16.msra.mxu0 0
        %1136 = vmatprep.subr.bf16.mxu0 0
        %1137 = vmatpush1.bf16.msra.mxu0 0
        %1138 = vmatprep.mubr.bf16.mxu0 0
        %1139 = vmatmul.mubr.bf16.gmra.mrb[0].mxu0 %v1101
        %v1140 = vpop.f32.mrb[0].mxu0
        %v1141 = vadd.f32 0.0, %v1140
        %v1142 = vpop.f32.mrb[0].mxu0
        %v1143 = vpop.f32.mrb[0].mxu0
        %v1144 = vpop.f32.mrb[0].mxu0
        %1145 = vdwg.mxu0
        %1146 = vrot.lane.b32.xlu0 %v786, 64
        %v1147 = vpop.permute.xlu0 %1146
        %v1149 = vsel %vm592, %v1048, 0
        %v1152 = vsel %vm754, %v1147, 0
        %1154 = vmatprep.subr.bf16.mxu0 0
        %1155 = vmatpush1.bf16.msra.mxu0 %v1152
        %1156 = vmatprep.subr.bf16.mxu0 0
        %1157 = vmatpush1.bf16.msra.mxu0 0
        %1158 = vmatprep.subr.bf16.mxu0 0
        %1159 = vmatpush1.bf16.msra.mxu0 0
        %1160 = vmatprep.subr.bf16.mxu0 0
        %1161 = vmatpush1.bf16.msra.mxu0 0
        %1162 = vmatprep.subr.bf16.mxu0 0
        %1163 = vmatpush1.bf16.msra.mxu0 0
        %1164 = vmatprep.subr.bf16.mxu0 0
        %1165 = vmatpush1.bf16.msra.mxu0 0
        %1166 = vmatprep.subr.bf16.mxu0 0
        %1167 = vmatpush1.bf16.msra.mxu0 0
        %1168 = vmatprep.subr.bf16.mxu0 0
        %1169 = vmatpush1.bf16.msra.mxu0 0
        %1170 = vmatprep.subr.bf16.mxu0 0
        %1171 = vmatpush1.bf16.msra.mxu0 0
        %1172 = vmatprep.subr.bf16.mxu0 0
        %1173 = vmatpush1.bf16.msra.mxu0 0
        %1174 = vmatprep.subr.bf16.mxu0 0
        %1175 = vmatpush1.bf16.msra.mxu0 0
        %1176 = vmatprep.subr.bf16.mxu0 0
        %1177 = vmatpush1.bf16.msra.mxu0 0
        %1178 = vmatprep.subr.bf16.mxu0 0
        %1179 = vmatpush1.bf16.msra.mxu0 0
        %1180 = vmatprep.subr.bf16.mxu0 0
        %1181 = vmatpush1.bf16.msra.mxu0 0
        %1182 = vmatprep.subr.bf16.mxu0 0
        %1183 = vmatpush1.bf16.msra.mxu0 0
        %1184 = vmatprep.subr.bf16.mxu0 0
        %1185 = vmatpush1.bf16.msra.mxu0 0
        %1186 = vmatprep.mubr.bf16.mxu0 0
        %1187 = vmatmul.mubr.bf16.gmra.mrb[0].mxu0 %v1149
        %v1188 = vpop.f32.mrb[0].mxu0
        %v1189 = vadd.f32 0.0, %v1188
        %v1190 = vpop.f32.mrb[0].mxu0
        %v1191 = vpop.f32.mrb[0].mxu0
        %v1192 = vpop.f32.mrb[0].mxu0
        %1193 = vdwg.mxu0
        %1194 = vrot.lane.b32.xlu0 %v787, 64
        %v1195 = vpop.permute.xlu0 %1194
        %v1197 = vsel %vm592, %v1049, 0
        %v1200 = vsel %vm754, %v1195, 0
        %1202 = vmatprep.subr.bf16.mxu0 0
        %1203 = vmatpush1.bf16.msra.mxu0 %v1200
        %1204 = vmatprep.subr.bf16.mxu0 0
        %1205 = vmatpush1.bf16.msra.mxu0 0
        %1206 = vmatprep.subr.bf16.mxu0 0
        %1207 = vmatpush1.bf16.msra.mxu0 0
        %1208 = vmatprep.subr.bf16.mxu0 0
        %1209 = vmatpush1.bf16.msra.mxu0 0
        %1210 = vmatprep.subr.bf16.mxu0 0
        %1211 = vmatpush1.bf16.msra.mxu0 0
        %1212 = vmatprep.subr.bf16.mxu0 0
        %1213 = vmatpush1.bf16.msra.mxu0 0
        %1214 = vmatprep.subr.bf16.mxu0 0
        %1215 = vmatpush1.bf16.msra.mxu0 0
        %1216 = vmatprep.subr.bf16.mxu0 0
        %1217 = vmatpush1.bf16.msra.mxu0 0
        %1218 = vmatprep.subr.bf16.mxu0 0
        %1219 = vmatpush1.bf16.msra.mxu0 0
        %1220 = vmatprep.subr.bf16.mxu0 0
        %1221 = vmatpush1.bf16.msra.mxu0 0
        %1222 = vmatprep.subr.bf16.mxu0 0
        %1223 = vmatpush1.bf16.msra.mxu0 0
        %1224 = vmatprep.subr.bf16.mxu0 0
        %1225 = vmatpush1.bf16.msra.mxu0 0
        %1226 = vmatprep.subr.bf16.mxu0 0
        %1227 = vmatpush1.bf16.msra.mxu0 0
        %1228 = vmatprep.subr.bf16.mxu0 0
        %1229 = vmatpush1.bf16.msra.mxu0 0
        %1230 = vmatprep.subr.bf16.mxu0 0
        %1231 = vmatpush1.bf16.msra.mxu0 0
        %1232 = vmatprep.subr.bf16.mxu0 0
        %1233 = vmatpush1.bf16.msra.mxu0 0
        %1234 = vmatprep.mubr.bf16.mxu0 0
        %1235 = vmatmul.mubr.bf16.gmra.mrb[0].mxu0 %v1197
        %v1236 = vpop.f32.mrb[0].mxu0
        %v1237 = vadd.f32 0.0, %v1236
        %v1238 = vpop.f32.mrb[0].mxu0
        %v1239 = vpop.f32.mrb[0].mxu0
        %v1240 = vpop.f32.mrb[0].mxu0
        %1241 = vdwg.mxu0
        %v1242 = vrcp.pop %v1036
        %v1243 = vrcp.pop %v1039
        %v1244 = vrcp.pop %v1042
        %v1245 = vrcp.pop %v1045
        %v1246 = vmul.f32 %v1093, %v1242
        %v1247 = vmul.f32 %v1141, %v1243
        %v1248 = vmul.f32 %v1189, %v1244
        %v1249 = vmul.f32 %v1237, %v1245
        %1251 = vrot.lane.b32.xlu0 %v1247, 8
        %v1252 = vpop.permute.xlu0 %1251
        %1255 = vrot.lane.b32.xlu0 %v1248, 16
        %v1256 = vpop.permute.xlu0 %1255
        %1259 = vrot.lane.b32.xlu0 %v1249, 24
        %v1260 = vpop.permute.xlu0 %1259
        %v1262 = vsel %vm592, %v1246, %v1252
        %vm1263 = vcmask 130048
        %v1264 = vsel %vm1263, %v1262, %v1256
        %vm1265 = vcmask 195584
        %v1266 = vsel %vm1265, %v1264, %v1260
        %v1267 = vld [vmem:[%s6] sm:$0x1]
        %v1268 = vld [vmem:[%s7] sm:$0x1]
        %v1269 = vadd.f32 %v1266, %v478
        %v1270 = vsel %vm496, %v1269, 0.0
        %1271 = vadd.xlane.f32.xlu0 %v1270
        %v1272 = vpop.xlane.xlu0 %1271
        %v1273 = vrcp.pop 32.0
        %v1274 = vmul.f32 %v1272, %v1273
        %v1275 = vsub.f32 %v1269, %v1274
        %v1276 = vmul.f32 %v1275, %v1275
        %v1277 = vsel %vm496, %v1276, 0.0
        %1278 = vadd.xlane.f32.xlu0 %v1277
        %v1279 = vpop.xlane.xlu0 %1278
        %v1280 = vmul.f32 %v1279, %v1273
        %v1281 = vadd.f32 %v1280, 1e-12
        %v1282 = vrsqrt.pop %v1281
        %v1283 = vmul.f32 %v1275, %v1282
        %v1285 = vlaneseq
        %v1286 = vshrl.u32 %v1285, 7
        %v1287 = vsub.s32 0, %v1286
        %v1288 = vrot.slane %v1267, %v1287
        %v1290 = vmul.f32 %v1283, %v1288
        %v1292 = vlaneseq
        %v1293 = vshrl.u32 %v1292, 7
        %v1294 = vsub.s32 0, %v1293
        %v1295 = vrot.slane %v1268, %v1294
        %v1297 = vadd.f32 %v1290, %v1295
        %v1298 = vld [vmem:[%s8] sm:$0xf]
        %v1299 = vld [vmem:[%s8 + $0x4] sm:$0xf]
        %v1300 = vld [vmem:[%s8 + $0x8] sm:$0xf]
        %v1301 = vld [vmem:[%s8 + $0xc] sm:$0xf]
        %v1302 = vld [vmem:[%s9] sm:$0x1]
        %v1303 = vld [vmem:[%s10] sm:$0xf]
        %v1304 = vld [vmem:[%s10 + $0x4] sm:$0xf]
        %v1305 = vld [vmem:[%s10 + $0x8] sm:$0xf]
        %v1306 = vld [vmem:[%s10 + $0xc] sm:$0xf]
        %v1307 = vld [vmem:[%s10 + $0x10] sm:$0xf]
        %v1308 = vld [vmem:[%s10 + $0x14] sm:$0xf]
        %v1309 = vld [vmem:[%s10 + $0x18] sm:$0xf]
        %v1310 = vld [vmem:[%s10 + $0x1c] sm:$0xf]
        %v1311 = vld [vmem:[%s11] sm:$0x1]
        %v1312 = vpack.c.bf16 %v1297, %v1297
        %v1314 = vlaneseq
        %v1315 = vshrl.u32 %v1314, 7
        %v1316 = vsub.s32 0, %v1315
        %v1317 = vrot.slane %v1302, %v1316
        %v1323 = vunpack.c.l.b16 %v1298
        %v1324 = vunpack.c.l.b16 %v1299
        %v1325 = vunpack.c.l.b16 %v1300
        %v1326 = vunpack.c.l.b16 %v1301
        %v1327 = vpack.c.b16 %v1324, %v1323
        %v1328 = vpack.c.b16 %v1326, %v1325
        %v1332 = vsel %vm496, %v1312, 0
        %1334 = vmatprep.subr.bf16.mxu0 0
        %1335 = vmatpush1.bf16.msra.mxu0 %v1327
        %1336 = vmatprep.subr.bf16.mxu0 0
        %1337 = vmatpush1.bf16.msra.mxu0 %v1328
        %1338 = vmatprep.subr.bf16.mxu0 0
        %1339 = vmatpush1.bf16.msra.mxu0 0
        %1340 = vmatprep.subr.bf16.mxu0 0
        %1341 = vmatpush1.bf16.msra.mxu0 0
        %1342 = vmatprep.subr.bf16.mxu0 0
        %1343 = vmatpush1.bf16.msra.mxu0 0
        %1344 = vmatprep.subr.bf16.mxu0 0
        %1345 = vmatpush1.bf16.msra.mxu0 0
        %1346 = vmatprep.subr.bf16.mxu0 0
        %1347 = vmatpush1.bf16.msra.mxu0 0
        %1348 = vmatprep.subr.bf16.mxu0 0
        %1349 = vmatpush1.bf16.msra.mxu0 0
        %1350 = vmatprep.subr.bf16.mxu0 0
        %1351 = vmatpush1.bf16.msra.mxu0 0
        %1352 = vmatprep.subr.bf16.mxu0 0
        %1353 = vmatpush1.bf16.msra.mxu0 0
        %1354 = vmatprep.subr.bf16.mxu0 0
        %1355 = vmatpush1.bf16.msra.mxu0 0
        %1356 = vmatprep.subr.bf16.mxu0 0
        %1357 = vmatpush1.bf16.msra.mxu0 0
        %1358 = vmatprep.subr.bf16.mxu0 0
        %1359 = vmatpush1.bf16.msra.mxu0 0
        %1360 = vmatprep.subr.bf16.mxu0 0
        %1361 = vmatpush1.bf16.msra.mxu0 0
        %1362 = vmatprep.subr.bf16.mxu0 0
        %1363 = vmatpush1.bf16.msra.mxu0 0
        %1364 = vmatprep.subr.bf16.mxu0 0
        %1365 = vmatpush1.bf16.msra.mxu0 0
        %1366 = vmatprep.mubr.bf16.mxu0 0
        %1367 = vmatmul.mubr.bf16.gmra.mrb[0].mxu0 %v1332
        %v1368 = vpop.f32.mrb[0].mxu0
        %v1369 = vadd.f32 %v1317, %v1368
        %v1370 = vpop.f32.mrb[0].mxu0
        %v1371 = vpop.f32.mrb[0].mxu0
        %v1372 = vpop.f32.mrb[0].mxu0
        %1373 = vdwg.mxu0
        %v1374 = vmax.f32 %v1369, 0.0
        %v1375 = vpack.c.bf16 %v1374, %v1374
        %v1377 = vlaneseq
        %v1378 = vshrl.u32 %v1377, 7
        %v1379 = vsub.s32 0, %v1378
        %v1380 = vrot.slane %v1311, %v1379
        %v1390 = vunpack.c.l.b16 %v1303
        %v1391 = vunpack.c.l.b16 %v1304
        %v1392 = vunpack.c.l.b16 %v1305
        %v1393 = vunpack.c.l.b16 %v1306
        %v1394 = vunpack.c.l.b16 %v1307
        %v1395 = vunpack.c.l.b16 %v1308
        %v1396 = vunpack.c.l.b16 %v1309
        %v1397 = vunpack.c.l.b16 %v1310
        %v1398 = vpack.c.b16 %v1391, %v1390
        %v1399 = vpack.c.b16 %v1393, %v1392
        %v1400 = vpack.c.b16 %v1395, %v1394
        %v1401 = vpack.c.b16 %v1397, %v1396
        %vm1406 = vcmask 523264
        %v1408 = vsel %vm1406, %v1375, 0
        %1410 = vmatprep.subr.bf16.mxu0 0
        %1411 = vmatpush1.bf16.msra.mxu0 %v1398
        %1412 = vmatprep.subr.bf16.mxu0 0
        %1413 = vmatpush1.bf16.msra.mxu0 %v1399
        %1414 = vmatprep.subr.bf16.mxu0 0
        %1415 = vmatpush1.bf16.msra.mxu0 %v1400
        %1416 = vmatprep.subr.bf16.mxu0 0
        %1417 = vmatpush1.bf16.msra.mxu0 %v1401
        %1418 = vmatprep.subr.bf16.mxu0 0
        %1419 = vmatpush1.bf16.msra.mxu0 0
        %1420 = vmatprep.subr.bf16.mxu0 0
        %1421 = vmatpush1.bf16.msra.mxu0 0
        %1422 = vmatprep.subr.bf16.mxu0 0
        %1423 = vmatpush1.bf16.msra.mxu0 0
        %1424 = vmatprep.subr.bf16.mxu0 0
        %1425 = vmatpush1.bf16.msra.mxu0 0
        %1426 = vmatprep.subr.bf16.mxu0 0
        %1427 = vmatpush1.bf16.msra.mxu0 0
        %1428 = vmatprep.subr.bf16.mxu0 0
        %1429 = vmatpush1.bf16.msra.mxu0 0
        %1430 = vmatprep.subr.bf16.mxu0 0
        %1431 = vmatpush1.bf16.msra.mxu0 0
        %1432 = vmatprep.subr.bf16.mxu0 0
        %1433 = vmatpush1.bf16.msra.mxu0 0
        %1434 = vmatprep.subr.bf16.mxu0 0
        %1435 = vmatpush1.bf16.msra.mxu0 0
        %1436 = vmatprep.subr.bf16.mxu0 0
        %1437 = vmatpush1.bf16.msra.mxu0 0
        %1438 = vmatprep.subr.bf16.mxu0 0
        %1439 = vmatpush1.bf16.msra.mxu0 0
        %1440 = vmatprep.subr.bf16.mxu0 0
        %1441 = vmatpush1.bf16.msra.mxu0 0
        %1442 = vmatprep.mubr.bf16.mxu0 0
        %1443 = vmatmul.mubr.bf16.gmra.mrb[0].mxu0 %v1408
        %v1444 = vpop.f32.mrb[0].mxu0
        %v1445 = vadd.f32 %v1380, %v1444
        %v1446 = vpop.f32.mrb[0].mxu0
        %v1447 = vpop.f32.mrb[0].mxu0
        %v1448 = vpop.f32.mrb[0].mxu0
        %1449 = vdwg.mxu0
        %v1450 = vld [vmem:[%s12] sm:$0x1]
        %v1451 = vld [vmem:[%s13] sm:$0x1]
        %v1452 = vadd.f32 %v1445, %v1297
        %v1453 = vsel %vm496, %v1452, 0.0
        %1454 = vadd.xlane.f32.xlu0 %v1453
        %v1455 = vpop.xlane.xlu0 %1454
        %v1456 = vmul.f32 %v1455, %v1273
        %v1457 = vsub.f32 %v1452, %v1456
        %v1458 = vmul.f32 %v1457, %v1457
        %v1459 = vsel %vm496, %v1458, 0.0
        %1460 = vadd.xlane.f32.xlu0 %v1459
        %v1461 = vpop.xlane.xlu0 %1460
        %v1462 = vmul.f32 %v1461, %v1273
        %v1463 = vadd.f32 %v1462, 1e-12
        %v1464 = vrsqrt.pop %v1463
        %v1465 = vmul.f32 %v1457, %v1464
        %v1467 = vlaneseq
        %v1468 = vshrl.u32 %v1467, 7
        %v1469 = vsub.s32 0, %v1468
        %v1470 = vrot.slane %v1450, %v1469
        %v1472 = vmul.f32 %v1465, %v1470
        %v1474 = vlaneseq
        %v1475 = vshrl.u32 %v1474, 7
        %v1476 = vsub.s32 0, %v1475
        %v1477 = vrot.slane %v1451, %v1476
        %v1479 = vadd.f32 %v1472, %v1477
        %1480 = vst.msk [vmem:[%s469] sm:$0xff] %vm496, %v1479
        %s1481 = sand.u32 %s340, 1
        %s1482 = scalar_lea.sflag [#allocation3], %s1481
        %s1483 = sand.u32 %s340, 1
        %s1484 = smul.addr %s1483, 8
        %s1485 = scalar_lea.vmem [#allocation2], %s1484
        // Predicated region
        $region77: #{tpu_custom_call.1} parent=75 // pred_check
          %p1486 = pneg %p350
        $region78: #{tpu_custom_call.1} parent=75 // pred_check_branch
          %1488 = sbr.rel (%p1486) target = $region80
        $region79: #{tpu_custom_call.1} parent=75 // pred_region
          %s1490 = ssub.s32 128, 128
          %1491 = vsyncadd %s1482, %s1490
          %s1492 = smul.addr %s28, 128
          %s1493 = scalar_lea.hbm %s14, %s1492
          %s1495 = sshll.u32 %s1485, 4
          %s1496 = int_to_ptr.vmem [resolvable:$true] %s1495
          %1498 = dma.vmem_to_hbm [thread:$0]  %s1496, 128, %s1493, %s1482
        $region80: #{tpu_custom_call.1} parent=75 // pred_fallthru
          _
      $region76: #{tpu_custom_call.1} parent=5 // pred_fallthru
        _
      %p1499 = scmp.le.s32.totalorder 2, %s23
      // Predicated region
      $region81: #{tpu_custom_call.1} parent=5 // pred_check
        %p1500 = pneg %p1499
      $region82: #{tpu_custom_call.1} parent=5 // pred_check_branch
        %1502 = sbr.rel (%p1500) target = $region84
      $region83: #{tpu_custom_call.1} parent=5 // pred_region
        %s1503 = ssub.s32 %s23, 2
        // Predicated region
        $region85: #{tpu_custom_call.1} parent=83 // pred_check
          %p1504 = pneg %p356
        $region86: #{tpu_custom_call.1} parent=83 // pred_check_branch
          %1506 = sbr.rel (%p1504) target = $region88
        $region87: #{tpu_custom_call.1} parent=83 // pred_region
          %s1507 = sand.u32 %s341, 1
          %s1508 = scalar_lea.sflag [#allocation3], %s1507
          %s1509 = sand.u32 %s341, 1
          %s1510 = smul.addr %s1509, 8
          %s1511 = scalar_lea.vmem [#allocation2], %s1510
          %1512 = dma.done %s1508, 128
        $region88: #{tpu_custom_call.1} parent=83 // pred_fallthru
          _
      $region84: #{tpu_custom_call.1} parent=5 // pred_fallthru
        _
    $region6: #{tpu_custom_call.1} parent=1 // loop_footer
      %s27 = sadd.s32 1, %s23
    $region7: #{tpu_custom_call.1} parent=1 // loop_footer_branch
      %22 = sbr.rel target = $region3
    $region8: #{tpu_custom_call.1} parent=1 // loop_exit
      _
    %1513 = vsyncpa [#allocation3], 1
    %s1514 = scalar_lea.sflag [#allocation3], 1
    %1515 = vsyncpa %s1514, 1

</llo_original>
